<compile_context>
chip_gen: v7x
topology: tpu7x:2x2x1
jax: 0.10.0
libtpu: 0.0.40
codegen_flags: <defaults>
</compile_context>

<pallas_src>
import math

import jax
import jax.numpy as jnp
from jax.experimental import pallas as pl

B, S, D = 2, 8, 32          # batch, seq, model size
H = 4                       # attention heads
DH = D // H                 # head dim
DFF = 64                    # FFN hidden size
EPS = 1e-6                  # LayerNorm eps (added to std, as in the PyTorch code)
BS = B * S
NEG_INF = -1e9


def _mm(a, b):
    # MXU matmul with f32 accumulation.
    return jnp.dot(a, b, preferred_element_type=jnp.float32)


def _layernorm(xs, a, b):
    # torch: mean over features, torch.std (Bessel-corrected, n-1), eps added to std.
    mean = jnp.mean(xs, axis=-1, keepdims=True)
    diff = xs - mean
    var = jnp.sum(diff * diff, axis=-1, keepdims=True) * (1.0 / (D - 1))
    return a * diff / (jnp.sqrt(var) + EPS) + b


def encoder_sublayer_kernel(x_ref, amask_ref, ln1a_ref, ln1b_ref,
                            wqkv_ref, bqkv_ref, wo_ref, bo_ref,
                            ln2a_ref, ln2b_ref, w1_ref, b1_ref,
                            w2_ref, b2_ref, o_ref):
    x = x_ref[...]                                        # (BS, D)

    # ---------- sublayer 1: x1 = x + MHA(LN(x), mask) ----------
    xn = _layernorm(x, ln1a_ref[...], ln1b_ref[...])
    qkv = _mm(xn, wqkv_ref[...]) + bqkv_ref[...]          # (BS, 3D) fused QKV

    am = amask_ref[...]                                   # (BS, BS) additive mask:
    scale = 1.0 / math.sqrt(DH)                           # 0 visible / -1e9 masked or cross-batch
    attn_out = jnp.zeros((BS, D), jnp.float32)
    for h in range(H):                                    # static unroll, H=4
        lo = h * DH
        qh = qkv[:, lo:lo + DH]                           # (BS, DH)
        kh = qkv[:, D + lo:D + lo + DH]                   # (BS, DH)
        vh = qkv[:, 2 * D + lo:2 * D + lo + DH]           # (BS, DH)
        s = jax.lax.dot_general(qh, kh, (((1,), (1,)), ((), ())),
                                preferred_element_type=jnp.float32)
        s = s * scale + am                                # (BS, BS)
        s = s - jnp.max(s, axis=-1, keepdims=True)
        p = jnp.exp(s)
        p = p / jnp.sum(p, axis=-1, keepdims=True)        # exact divide (accuracy)
        ctx = _mm(p, vh)                                  # (BS, DH)
        # Accumulate through the matching Wo row-block (8-aligned sublane slice)
        # instead of lane-concatenating head outputs.
        attn_out = attn_out + _mm(ctx, wo_ref[lo:lo + DH, :])
    x1 = x + attn_out + bo_ref[...]                       # (BS, D)
    # attn_score is discarded by EncoderSubLayer (`x, _ = ...`), so not emitted.

    # ---------- sublayer 2: out = x1 + FFN(LN(x1)) ----------
    xn2 = _layernorm(x1, ln2a_ref[...], ln2b_ref[...])
    h1 = jnp.maximum(_mm(xn2, w1_ref[...]) + b1_ref[...], 0.0)
    o_ref[...] = x1 + _mm(h1, w2_ref[...]) + b2_ref[...]


# ---------------- wrapper ----------------

@jax.jit
def encoder_sublayer(x, mask, p):
    xf = x.reshape(BS, D)
    # Block-diagonal additive mask over the flattened (batch*seq) rows:
    # 0 where query/key are in the same batch AND the key is visible, else -1e9.
    bid = jnp.arange(BS, dtype=jnp.int32) // S                     # (BS,)
    key_ok = mask.reshape(BS) > 0.5                                # (BS,)
    visible = (bid[:, None] == bid[None, :]) & key_ok[None, :]     # (BS, BS)
    add_mask = jnp.where(visible, 0.0, NEG_INF).astype(jnp.float32)

    wqkv = jnp.concatenate([p["wq"], p["wk"], p["wv"]], axis=1)    # (D, 3D)
    bqkv = jnp.concatenate([p["bq"], p["bk"], p["bv"]], axis=1)    # (1, 3D)

    out = pl.pallas_call(
        encoder_sublayer_kernel,
        out_shape=jax.ShapeDtypeStruct((BS, D), jnp.float32),
        # No grid: single block, whole problem resident in VMEM (~50 KB),
        # every operand DMA'd exactly once, single kernel launch.
    )(xf, add_mask, p["ln1_a"], p["ln1_b"], wqkv, bqkv, p["wo"], p["bo"],
      p["ln2_a"], p["ln2_b"], p["w1"], p["b1"], p["w2"], p["b2"])
    return out.reshape(B, S, D)


# ---------------- pure-JAX reference (for sanity check) ----------------

_HI = jax.lax.Precision.HIGHEST   # accurate f32 contractions for the reference


def ref_forward(x, mask, p):
    def ln(z, a, b):
        mean = z.mean(axis=2, keepdims=True)
        var = ((z - mean) ** 2).sum(axis=2, keepdims=True) / (D - 1)
        return a * (z - mean) / (jnp.sqrt(var) + EPS) + b

    xn = ln(x, p["ln1_a"], p["ln1_b"])
    q = jnp.einsum("bsd,de->bse", xn, p["wq"], precision=_HI) + p["bq"]
    k = jnp.einsum("bsd,de->bse", xn, p["wk"], precision=_HI) + p["bk"]
    v = jnp.einsum("bsd,de->bse", xn, p["wv"], precision=_HI) + p["bv"]
    qh = q.reshape(B, S, H, DH).transpose(0, 2, 1, 3)
    kh = k.reshape(B, S, H, DH).transpose(0, 2, 1, 3)
    vh = v.reshape(B, S, H, DH).transpose(0, 2, 1, 3)
    scores = jnp.einsum("bhqd,bhkd->bhqk", qh, kh, precision=_HI) / math.sqrt(DH)
    scores = jnp.where(mask[:, None, :, :] == 0, NEG_INF, scores)
    pattn = jax.nn.softmax(scores, axis=-1)
    ao = jnp.einsum("bhqk,bhkd->bhqd", pattn, vh, precision=_HI)
    ao = ao.transpose(0, 2, 1, 3).reshape(B, S, D)
    x1 = x + (jnp.einsum("bsd,de->bse", ao, p["wo"], precision=_HI) + p["bo"])
    xn2 = ln(x1, p["ln2_a"], p["ln2_b"])
    h1 = jnp.maximum(jnp.einsum("bsd,df->bsf", xn2, p["w1"], precision=_HI) + p["b1"], 0.0)
    ff = jnp.einsum("bsf,fd->bsd", h1, p["w2"], precision=_HI) + p["b2"]
    return x1 + ff


# ---------------- main ----------------

if __name__ == "__main__":
    key = jax.random.PRNGKey(0)
    keys = jax.random.split(key, 16)
    sc = 0.1
    params = {
        # LayerNorm params init exactly as the PyTorch module: a=ones, b=ones.
        "ln1_a": jnp.ones((1, D), jnp.float32), "ln1_b": jnp.ones((1, D), jnp.float32),
        "ln2_a": jnp.ones((1, D), jnp.float32), "ln2_b": jnp.ones((1, D), jnp.float32),
        "wq": sc * jax.random.normal(keys[0], (D, D), jnp.float32),
        "bq": sc * jax.random.normal(keys[1], (1, D), jnp.float32),
        "wk": sc * jax.random.normal(keys[2], (D, D), jnp.float32),
        "bk": sc * jax.random.normal(keys[3], (1, D), jnp.float32),
        "wv": sc * jax.random.normal(keys[4], (D, D), jnp.float32),
        "bv": sc * jax.random.normal(keys[5], (1, D), jnp.float32),
        "wo": sc * jax.random.normal(keys[6], (D, D), jnp.float32),
        "bo": sc * jax.random.normal(keys[7], (1, D), jnp.float32),
        "w1": sc * jax.random.normal(keys[8], (D, DFF), jnp.float32),
        "b1": sc * jax.random.normal(keys[9], (1, DFF), jnp.float32),
        "w2": sc * jax.random.normal(keys[10], (DFF, D), jnp.float32),
        "b2": sc * jax.random.normal(keys[11], (1, D), jnp.float32),
    }

    x = jax.random.normal(keys[12], (B, S, D), jnp.float32)
    x_mask = jnp.ones((B, 1, S), jnp.float32)
    x_mask = x_mask.at[1, 0, S - 2:].set(0.0)   # mask out last 2 keys of batch 1

    out = encoder_sublayer(x, x_mask, params)
    out = jax.block_until_ready(out)

    ref = ref_forward(x, x_mask, params)
    assert out.shape == (B, S, D)
    # Tolerance rationale: the reference uses Precision.HIGHEST; the kernel's
    # MXU contractions run at the default TPU contraction precision, so the
    # worst-case divergence is one bf16-rounded contraction path (~5e-3 abs on
    # O(1) outputs). 1e-2 absorbs that while still catching semantic errors,
    # which here are >= 1e-1.
    assert jnp.allclose(out, ref, rtol=1e-2, atol=1e-2), "mismatch vs reference"

    # TODO(synk): stochastic dropout (p>0, training mode) not reproduced; inference path only.
    print("KERNEL_OK")
</pallas_src>

<mosaic_0001>
module attributes {stable_mosaic.version = 11 : i64} {
  func.func @encoder_sublayer_kernel(%arg0: memref<16x32xf32, #tpu.memory_space<vmem>>, %arg1: memref<16x16xf32, #tpu.memory_space<vmem>>, %arg2: memref<1x32xf32, #tpu.memory_space<vmem>>, %arg3: memref<1x32xf32, #tpu.memory_space<vmem>>, %arg4: memref<32x96xf32, #tpu.memory_space<vmem>>, %arg5: memref<1x96xf32, #tpu.memory_space<vmem>>, %arg6: memref<32x32xf32, #tpu.memory_space<vmem>>, %arg7: memref<1x32xf32, #tpu.memory_space<vmem>>, %arg8: memref<1x32xf32, #tpu.memory_space<vmem>>, %arg9: memref<1x32xf32, #tpu.memory_space<vmem>>, %arg10: memref<32x64xf32, #tpu.memory_space<vmem>>, %arg11: memref<1x64xf32, #tpu.memory_space<vmem>>, %arg12: memref<64x32xf32, #tpu.memory_space<vmem>>, %arg13: memref<1x32xf32, #tpu.memory_space<vmem>>, %arg14: memref<16x32xf32, #tpu.memory_space<vmem>>) attributes {dimension_semantics = [], scalar_prefetch = 0 : i64, scratch_operands = 0 : i64, tpu.core_type = #tpu.core_type<tc>} {
    %c0 = arith.constant 0 : index
    %c0_0 = arith.constant 0 : index
    %0 = vector.load %arg0[%c0, %c0_0] : memref<16x32xf32, #tpu.memory_space<vmem>>, vector<16x32xf32>
    %c0_1 = arith.constant 0 : index
    %c0_2 = arith.constant 0 : index
    %1 = vector.load %arg2[%c0_1, %c0_2] : memref<1x32xf32, #tpu.memory_space<vmem>>, vector<1x32xf32>
    %c0_3 = arith.constant 0 : index
    %c0_4 = arith.constant 0 : index
    %2 = vector.load %arg3[%c0_3, %c0_4] : memref<1x32xf32, #tpu.memory_space<vmem>>, vector<1x32xf32>
    %cst = arith.constant dense<0.000000e+00> : vector<16xf32>
    %3 = vector.multi_reduction <add>, %0, %cst [1] : vector<16x32xf32> to vector<16xf32>
    %4 = vector.shape_cast %3 : vector<16xf32> to vector<16x1xf32>
    %cst_5 = arith.constant 3.200000e+01 : f32
    %5 = vector.broadcast %cst_5 : f32 to vector<16x1xf32>
    %6 = arith.divf %4, %5 : vector<16x1xf32>
    %7 = vector.broadcast %6 : vector<16x1xf32> to vector<16x32xf32>
    %8 = arith.subf %0, %7 : vector<16x32xf32>
    %9 = arith.mulf %8, %8 : vector<16x32xf32>
    %cst_6 = arith.constant dense<0.000000e+00> : vector<16xf32>
    %10 = vector.multi_reduction <add>, %9, %cst_6 [1] : vector<16x32xf32> to vector<16xf32>
    %11 = vector.shape_cast %10 : vector<16xf32> to vector<16x1xf32>
    %cst_7 = arith.constant 0.0322580636 : f32
    %12 = vector.broadcast %cst_7 : f32 to vector<16x1xf32>
    %13 = arith.mulf %11, %12 : vector<16x1xf32>
    %14 = vector.broadcast %1 : vector<1x32xf32> to vector<16x32xf32>
    %15 = arith.mulf %14, %8 : vector<16x32xf32>
    %16 = math.sqrt %13 : vector<16x1xf32>
    %cst_8 = arith.constant 9.99999997E-7 : f32
    %17 = vector.broadcast %cst_8 : f32 to vector<16x1xf32>
    %18 = arith.addf %16, %17 : vector<16x1xf32>
    %19 = vector.broadcast %18 : vector<16x1xf32> to vector<16x32xf32>
    %20 = arith.divf %15, %19 : vector<16x32xf32>
    %21 = vector.broadcast %2 : vector<1x32xf32> to vector<16x32xf32>
    %22 = arith.addf %20, %21 : vector<16x32xf32>
    %c0_9 = arith.constant 0 : index
    %c0_10 = arith.constant 0 : index
    %23 = vector.load %arg4[%c0_9, %c0_10] : memref<32x96xf32, #tpu.memory_space<vmem>>, vector<32x96xf32>
    %cst_11 = arith.constant dense<0.000000e+00> : vector<16x96xf32>
    %24 = tpu.matmul %22, %23, %cst_11 {dimension_numbers = #tpu.dot_dimension_numbers<[1], [0], [0], [1], [0, 0, 1, 1], [], []>} : vector<16x32xf32>, vector<32x96xf32>, vector<16x96xf32> -> vector<16x96xf32>
    %c0_12 = arith.constant 0 : index
    %c0_13 = arith.constant 0 : index
    %25 = vector.load %arg5[%c0_12, %c0_13] : memref<1x96xf32, #tpu.memory_space<vmem>>, vector<1x96xf32>
    %26 = vector.broadcast %25 : vector<1x96xf32> to vector<16x96xf32>
    %27 = arith.addf %24, %26 : vector<16x96xf32>
    %c0_14 = arith.constant 0 : index
    %c0_15 = arith.constant 0 : index
    %28 = vector.load %arg1[%c0_14, %c0_15] : memref<16x16xf32, #tpu.memory_space<vmem>>, vector<16x16xf32>
    %cst_16 = arith.constant 0.000000e+00 : f32
    %29 = vector.broadcast %cst_16 : f32 to vector<16x32xf32>
    %30 = vector.extract_strided_slice %27 {offsets = [0, 0], sizes = [16, 8], strides = [1, 1]} : vector<16x96xf32> to vector<16x8xf32>
    %31 = vector.extract_strided_slice %27 {offsets = [0, 32], sizes = [16, 8], strides = [1, 1]} : vector<16x96xf32> to vector<16x8xf32>
    %32 = vector.extract_strided_slice %27 {offsets = [0, 64], sizes = [16, 8], strides = [1, 1]} : vector<16x96xf32> to vector<16x8xf32>
    %cst_17 = arith.constant dense<0.000000e+00> : vector<16x16xf32>
    %33 = tpu.matmul %30, %31, %cst_17 {dimension_numbers = #tpu.dot_dimension_numbers<[1], [1], [0], [0], [0, 0, 1, 0], [], []>} : vector<16x8xf32>, vector<16x8xf32>, vector<16x16xf32> -> vector<16x16xf32>
    %cst_18 = arith.constant 0.353553385 : f32
    %34 = vector.broadcast %cst_18 : f32 to vector<16x16xf32>
    %35 = arith.mulf %33, %34 : vector<16x16xf32>
    %36 = arith.addf %35, %28 : vector<16x16xf32>
    %cst_19 = arith.constant dense<0xFF800000> : vector<16xf32>
    %37 = vector.multi_reduction <maximumf>, %36, %cst_19 [1] : vector<16x16xf32> to vector<16xf32>
    %38 = vector.shape_cast %37 : vector<16xf32> to vector<16x1xf32>
    %39 = vector.broadcast %38 : vector<16x1xf32> to vector<16x16xf32>
    %40 = arith.subf %36, %39 : vector<16x16xf32>
    %41 = math.exp %40 : vector<16x16xf32>
    %cst_20 = arith.constant dense<0.000000e+00> : vector<16xf32>
    %42 = vector.multi_reduction <add>, %41, %cst_20 [1] : vector<16x16xf32> to vector<16xf32>
    %43 = vector.shape_cast %42 : vector<16xf32> to vector<16x1xf32>
    %44 = vector.broadcast %43 : vector<16x1xf32> to vector<16x16xf32>
    %45 = arith.divf %41, %44 : vector<16x16xf32>
    %cst_21 = arith.constant dense<0.000000e+00> : vector<16x8xf32>
    %46 = tpu.matmul %45, %32, %cst_21 {dimension_numbers = #tpu.dot_dimension_numbers<[1], [0], [0], [1], [0, 0, 1, 1], [], []>} : vector<16x16xf32>, vector<16x8xf32>, vector<16x8xf32> -> vector<16x8xf32>
    %c0_22 = arith.constant 0 : index
    %c0_23 = arith.constant 0 : index
    %47 = vector.load %arg6[%c0_22, %c0_23] : memref<32x32xf32, #tpu.memory_space<vmem>>, vector<8x32xf32>
    %cst_24 = arith.constant dense<0.000000e+00> : vector<16x32xf32>
    %48 = tpu.matmul %46, %47, %cst_24 {dimension_numbers = #tpu.dot_dimension_numbers<[1], [0], [0], [1], [0, 0, 1, 1], [], []>} : vector<16x8xf32>, vector<8x32xf32>, vector<16x32xf32> -> vector<16x32xf32>
    %49 = arith.addf %29, %48 : vector<16x32xf32>
    %50 = vector.extract_strided_slice %27 {offsets = [0, 8], sizes = [16, 8], strides = [1, 1]} : vector<16x96xf32> to vector<16x8xf32>
    %51 = vector.extract_strided_slice %27 {offsets = [0, 40], sizes = [16, 8], strides = [1, 1]} : vector<16x96xf32> to vector<16x8xf32>
    %52 = vector.extract_strided_slice %27 {offsets = [0, 72], sizes = [16, 8], strides = [1, 1]} : vector<16x96xf32> to vector<16x8xf32>
    %cst_25 = arith.constant dense<0.000000e+00> : vector<16x16xf32>
    %53 = tpu.matmul %50, %51, %cst_25 {dimension_numbers = #tpu.dot_dimension_numbers<[1], [1], [0], [0], [0, 0, 1, 0], [], []>} : vector<16x8xf32>, vector<16x8xf32>, vector<16x16xf32> -> vector<16x16xf32>
    %cst_26 = arith.constant 0.353553385 : f32
    %54 = vector.broadcast %cst_26 : f32 to vector<16x16xf32>
    %55 = arith.mulf %53, %54 : vector<16x16xf32>
    %56 = arith.addf %55, %28 : vector<16x16xf32>
    %cst_27 = arith.constant dense<0xFF800000> : vector<16xf32>
    %57 = vector.multi_reduction <maximumf>, %56, %cst_27 [1] : vector<16x16xf32> to vector<16xf32>
    %58 = vector.shape_cast %57 : vector<16xf32> to vector<16x1xf32>
    %59 = vector.broadcast %58 : vector<16x1xf32> to vector<16x16xf32>
    %60 = arith.subf %56, %59 : vector<16x16xf32>
    %61 = math.exp %60 : vector<16x16xf32>
    %cst_28 = arith.constant dense<0.000000e+00> : vector<16xf32>
    %62 = vector.multi_reduction <add>, %61, %cst_28 [1] : vector<16x16xf32> to vector<16xf32>
    %63 = vector.shape_cast %62 : vector<16xf32> to vector<16x1xf32>
    %64 = vector.broadcast %63 : vector<16x1xf32> to vector<16x16xf32>
    %65 = arith.divf %61, %64 : vector<16x16xf32>
    %cst_29 = arith.constant dense<0.000000e+00> : vector<16x8xf32>
    %66 = tpu.matmul %65, %52, %cst_29 {dimension_numbers = #tpu.dot_dimension_numbers<[1], [0], [0], [1], [0, 0, 1, 1], [], []>} : vector<16x16xf32>, vector<16x8xf32>, vector<16x8xf32> -> vector<16x8xf32>
    %c8 = arith.constant 8 : index
    %c0_30 = arith.constant 0 : index
    %67 = vector.load %arg6[%c8, %c0_30] : memref<32x32xf32, #tpu.memory_space<vmem>>, vector<8x32xf32>
    %cst_31 = arith.constant dense<0.000000e+00> : vector<16x32xf32>
    %68 = tpu.matmul %66, %67, %cst_31 {dimension_numbers = #tpu.dot_dimension_numbers<[1], [0], [0], [1], [0, 0, 1, 1], [], []>} : vector<16x8xf32>, vector<8x32xf32>, vector<16x32xf32> -> vector<16x32xf32>
    %69 = arith.addf %49, %68 : vector<16x32xf32>
    %70 = vector.extract_strided_slice %27 {offsets = [0, 16], sizes = [16, 8], strides = [1, 1]} : vector<16x96xf32> to vector<16x8xf32>
    %71 = vector.extract_strided_slice %27 {offsets = [0, 48], sizes = [16, 8], strides = [1, 1]} : vector<16x96xf32> to vector<16x8xf32>
    %72 = vector.extract_strided_slice %27 {offsets = [0, 80], sizes = [16, 8], strides = [1, 1]} : vector<16x96xf32> to vector<16x8xf32>
    %cst_32 = arith.constant dense<0.000000e+00> : vector<16x16xf32>
    %73 = tpu.matmul %70, %71, %cst_32 {dimension_numbers = #tpu.dot_dimension_numbers<[1], [1], [0], [0], [0, 0, 1, 0], [], []>} : vector<16x8xf32>, vector<16x8xf32>, vector<16x16xf32> -> vector<16x16xf32>
    %cst_33 = arith.constant 0.353553385 : f32
    %74 = vector.broadcast %cst_33 : f32 to vector<16x16xf32>
    %75 = arith.mulf %73, %74 : vector<16x16xf32>
    %76 = arith.addf %75, %28 : vector<16x16xf32>
    %cst_34 = arith.constant dense<0xFF800000> : vector<16xf32>
    %77 = vector.multi_reduction <maximumf>, %76, %cst_34 [1] : vector<16x16xf32> to vector<16xf32>
    %78 = vector.shape_cast %77 : vector<16xf32> to vector<16x1xf32>
    %79 = vector.broadcast %78 : vector<16x1xf32> to vector<16x16xf32>
    %80 = arith.subf %76, %79 : vector<16x16xf32>
    %81 = math.exp %80 : vector<16x16xf32>
    %cst_35 = arith.constant dense<0.000000e+00> : vector<16xf32>
    %82 = vector.multi_reduction <add>, %81, %cst_35 [1] : vector<16x16xf32> to vector<16xf32>
    %83 = vector.shape_cast %82 : vector<16xf32> to vector<16x1xf32>
    %84 = vector.broadcast %83 : vector<16x1xf32> to vector<16x16xf32>
    %85 = arith.divf %81, %84 : vector<16x16xf32>
    %cst_36 = arith.constant dense<0.000000e+00> : vector<16x8xf32>
    %86 = tpu.matmul %85, %72, %cst_36 {dimension_numbers = #tpu.dot_dimension_numbers<[1], [0], [0], [1], [0, 0, 1, 1], [], []>} : vector<16x16xf32>, vector<16x8xf32>, vector<16x8xf32> -> vector<16x8xf32>
    %c16 = arith.constant 16 : index
    %c0_37 = arith.constant 0 : index
    %87 = vector.load %arg6[%c16, %c0_37] : memref<32x32xf32, #tpu.memory_space<vmem>>, vector<8x32xf32>
    %cst_38 = arith.constant dense<0.000000e+00> : vector<16x32xf32>
    %88 = tpu.matmul %86, %87, %cst_38 {dimension_numbers = #tpu.dot_dimension_numbers<[1], [0], [0], [1], [0, 0, 1, 1], [], []>} : vector<16x8xf32>, vector<8x32xf32>, vector<16x32xf32> -> vector<16x32xf32>
    %89 = arith.addf %69, %88 : vector<16x32xf32>
    %90 = vector.extract_strided_slice %27 {offsets = [0, 24], sizes = [16, 8], strides = [1, 1]} : vector<16x96xf32> to vector<16x8xf32>
    %91 = vector.extract_strided_slice %27 {offsets = [0, 56], sizes = [16, 8], strides = [1, 1]} : vector<16x96xf32> to vector<16x8xf32>
    %92 = vector.extract_strided_slice %27 {offsets = [0, 88], sizes = [16, 8], strides = [1, 1]} : vector<16x96xf32> to vector<16x8xf32>
    %cst_39 = arith.constant dense<0.000000e+00> : vector<16x16xf32>
    %93 = tpu.matmul %90, %91, %cst_39 {dimension_numbers = #tpu.dot_dimension_numbers<[1], [1], [0], [0], [0, 0, 1, 0], [], []>} : vector<16x8xf32>, vector<16x8xf32>, vector<16x16xf32> -> vector<16x16xf32>
    %cst_40 = arith.constant 0.353553385 : f32
    %94 = vector.broadcast %cst_40 : f32 to vector<16x16xf32>
    %95 = arith.mulf %93, %94 : vector<16x16xf32>
    %96 = arith.addf %95, %28 : vector<16x16xf32>
    %cst_41 = arith.constant dense<0xFF800000> : vector<16xf32>
    %97 = vector.multi_reduction <maximumf>, %96, %cst_41 [1] : vector<16x16xf32> to vector<16xf32>
    %98 = vector.shape_cast %97 : vector<16xf32> to vector<16x1xf32>
    %99 = vector.broadcast %98 : vector<16x1xf32> to vector<16x16xf32>
    %100 = arith.subf %96, %99 : vector<16x16xf32>
    %101 = math.exp %100 : vector<16x16xf32>
    %cst_42 = arith.constant dense<0.000000e+00> : vector<16xf32>
    %102 = vector.multi_reduction <add>, %101, %cst_42 [1] : vector<16x16xf32> to vector<16xf32>
    %103 = vector.shape_cast %102 : vector<16xf32> to vector<16x1xf32>
    %104 = vector.broadcast %103 : vector<16x1xf32> to vector<16x16xf32>
    %105 = arith.divf %101, %104 : vector<16x16xf32>
    %cst_43 = arith.constant dense<0.000000e+00> : vector<16x8xf32>
    %106 = tpu.matmul %105, %92, %cst_43 {dimension_numbers = #tpu.dot_dimension_numbers<[1], [0], [0], [1], [0, 0, 1, 1], [], []>} : vector<16x16xf32>, vector<16x8xf32>, vector<16x8xf32> -> vector<16x8xf32>
    %c24 = arith.constant 24 : index
    %c0_44 = arith.constant 0 : index
    %107 = vector.load %arg6[%c24, %c0_44] : memref<32x32xf32, #tpu.memory_space<vmem>>, vector<8x32xf32>
    %cst_45 = arith.constant dense<0.000000e+00> : vector<16x32xf32>
    %108 = tpu.matmul %106, %107, %cst_45 {dimension_numbers = #tpu.dot_dimension_numbers<[1], [0], [0], [1], [0, 0, 1, 1], [], []>} : vector<16x8xf32>, vector<8x32xf32>, vector<16x32xf32> -> vector<16x32xf32>
    %109 = arith.addf %89, %108 : vector<16x32xf32>
    %110 = arith.addf %0, %109 : vector<16x32xf32>
    %c0_46 = arith.constant 0 : index
    %c0_47 = arith.constant 0 : index
    %111 = vector.load %arg7[%c0_46, %c0_47] : memref<1x32xf32, #tpu.memory_space<vmem>>, vector<1x32xf32>
    %112 = vector.broadcast %111 : vector<1x32xf32> to vector<16x32xf32>
    %113 = arith.addf %110, %112 : vector<16x32xf32>
    %c0_48 = arith.constant 0 : index
    %c0_49 = arith.constant 0 : index
    %114 = vector.load %arg8[%c0_48, %c0_49] : memref<1x32xf32, #tpu.memory_space<vmem>>, vector<1x32xf32>
    %c0_50 = arith.constant 0 : index
    %c0_51 = arith.constant 0 : index
    %115 = vector.load %arg9[%c0_50, %c0_51] : memref<1x32xf32, #tpu.memory_space<vmem>>, vector<1x32xf32>
    %cst_52 = arith.constant dense<0.000000e+00> : vector<16xf32>
    %116 = vector.multi_reduction <add>, %113, %cst_52 [1] : vector<16x32xf32> to vector<16xf32>
    %117 = vector.shape_cast %116 : vector<16xf32> to vector<16x1xf32>
    %cst_53 = arith.constant 3.200000e+01 : f32
    %118 = vector.broadcast %cst_53 : f32 to vector<16x1xf32>
    %119 = arith.divf %117, %118 : vector<16x1xf32>
    %120 = vector.broadcast %119 : vector<16x1xf32> to vector<16x32xf32>
    %121 = arith.subf %113, %120 : vector<16x32xf32>
    %122 = arith.mulf %121, %121 : vector<16x32xf32>
    %cst_54 = arith.constant dense<0.000000e+00> : vector<16xf32>
    %123 = vector.multi_reduction <add>, %122, %cst_54 [1] : vector<16x32xf32> to vector<16xf32>
    %124 = vector.shape_cast %123 : vector<16xf32> to vector<16x1xf32>
    %cst_55 = arith.constant 0.0322580636 : f32
    %125 = vector.broadcast %cst_55 : f32 to vector<16x1xf32>
    %126 = arith.mulf %124, %125 : vector<16x1xf32>
    %127 = vector.broadcast %114 : vector<1x32xf32> to vector<16x32xf32>
    %128 = arith.mulf %127, %121 : vector<16x32xf32>
    %129 = math.sqrt %126 : vector<16x1xf32>
    %cst_56 = arith.constant 9.99999997E-7 : f32
    %130 = vector.broadcast %cst_56 : f32 to vector<16x1xf32>
    %131 = arith.addf %129, %130 : vector<16x1xf32>
    %132 = vector.broadcast %131 : vector<16x1xf32> to vector<16x32xf32>
    %133 = arith.divf %128, %132 : vector<16x32xf32>
    %134 = vector.broadcast %115 : vector<1x32xf32> to vector<16x32xf32>
    %135 = arith.addf %133, %134 : vector<16x32xf32>
    %c0_57 = arith.constant 0 : index
    %c0_58 = arith.constant 0 : index
    %136 = vector.load %arg10[%c0_57, %c0_58] : memref<32x64xf32, #tpu.memory_space<vmem>>, vector<32x64xf32>
    %cst_59 = arith.constant dense<0.000000e+00> : vector<16x64xf32>
    %137 = tpu.matmul %135, %136, %cst_59 {dimension_numbers = #tpu.dot_dimension_numbers<[1], [0], [0], [1], [0, 0, 1, 1], [], []>} : vector<16x32xf32>, vector<32x64xf32>, vector<16x64xf32> -> vector<16x64xf32>
    %c0_60 = arith.constant 0 : index
    %c0_61 = arith.constant 0 : index
    %138 = vector.load %arg11[%c0_60, %c0_61] : memref<1x64xf32, #tpu.memory_space<vmem>>, vector<1x64xf32>
    %139 = vector.broadcast %138 : vector<1x64xf32> to vector<16x64xf32>
    %140 = arith.addf %137, %139 : vector<16x64xf32>
    %cst_62 = arith.constant 0.000000e+00 : f32
    %141 = vector.broadcast %cst_62 : f32 to vector<16x64xf32>
    %142 = arith.maximumf %140, %141 : vector<16x64xf32>
    %c0_63 = arith.constant 0 : index
    %c0_64 = arith.constant 0 : index
    %143 = vector.load %arg12[%c0_63, %c0_64] : memref<64x32xf32, #tpu.memory_space<vmem>>, vector<64x32xf32>
    %cst_65 = arith.constant dense<0.000000e+00> : vector<16x32xf32>
    %144 = tpu.matmul %142, %143, %cst_65 {dimension_numbers = #tpu.dot_dimension_numbers<[1], [0], [0], [1], [0, 0, 1, 1], [], []>} : vector<16x64xf32>, vector<64x32xf32>, vector<16x32xf32> -> vector<16x32xf32>
    %145 = arith.addf %113, %144 : vector<16x32xf32>
    %c0_66 = arith.constant 0 : index
    %c0_67 = arith.constant 0 : index
    %146 = vector.load %arg13[%c0_66, %c0_67] : memref<1x32xf32, #tpu.memory_space<vmem>>, vector<1x32xf32>
    %147 = vector.broadcast %146 : vector<1x32xf32> to vector<16x32xf32>
    %148 = arith.addf %145, %147 : vector<16x32xf32>
    %c0_68 = arith.constant 0 : index
    %c0_69 = arith.constant 0 : index
    %149 = vector.load %arg14[%c0_68, %c0_69] : memref<16x32xf32, #tpu.memory_space<vmem>>, vector<16x32xf32>
    tpu.vector_store %arg14[%c0_68, %c0_69], %148 {strides = array<i32>} : memref<16x32xf32, #tpu.memory_space<vmem>>, vector<16x32xf32>,
    return
  }
}

</mosaic_0001>

<llo_original>
// kernel: encoder_sublayer.1
$region0: #{encoder_sublayer.1}
  #allocation0 [shape = 'u32[]', space=smem, size = 0x4, offset = 0x4, fixed_abs, tag = 'smem constant byte address 0x4 - core index']
  #allocation1 [shape = 'u32[144,128]{1,0:T(1,128)}', space=vmem, size = 0x12000, scoped, tag = 'internal scratch']
  %s0 = inlined_call_operand.vmem [shape: f32[16,32], index: 0, kind: input, shape index: {}]
  %s1 = inlined_call_operand.vmem [shape: f32[16,16], index: 1, kind: input, shape index: {}]
  %s2 = inlined_call_operand.vmem [shape: f32[1,32], index: 2, kind: input, shape index: {}]
  %s3 = inlined_call_operand.vmem [shape: f32[1,32], index: 3, kind: input, shape index: {}]
  %s4 = inlined_call_operand.vmem [shape: f32[32,96], index: 4, kind: input, shape index: {}]
  %s5 = inlined_call_operand.vmem [shape: f32[1,96], index: 5, kind: input, shape index: {}]
  %s6 = inlined_call_operand.vmem [shape: f32[32,32], index: 6, kind: input, shape index: {}]
  %s7 = inlined_call_operand.vmem [shape: f32[1,32], index: 7, kind: input, shape index: {}]
  %s8 = inlined_call_operand.vmem [shape: f32[1,32], index: 8, kind: input, shape index: {}]
  %s9 = inlined_call_operand.vmem [shape: f32[1,32], index: 9, kind: input, shape index: {}]
  %s10 = inlined_call_operand.vmem [shape: f32[32,64], index: 10, kind: input, shape index: {}]
  %s11 = inlined_call_operand.vmem [shape: f32[1,64], index: 11, kind: input, shape index: {}]
  %s12 = inlined_call_operand.vmem [shape: f32[64,32], index: 12, kind: input, shape index: {}]
  %s13 = inlined_call_operand.vmem [shape: f32[1,32], index: 13, kind: input, shape index: {}]
  %s14 = inlined_call_operand.hbm [shape: f32[16,32], index: 14, kind: output, shape index: {}]
  %s15 = sld [smem:[#allocation0]]
  $region66: #{encoder_sublayer.1} parent=0
    _
  %s17 = ssub.s32 1, %s15
  %s18 = scalar_select 0, %s17, %s15
  $region1: #{encoder_sublayer.1} parent=0
    #allocation2 [shape = 'u8[8192]{0}', space=vmem, size = 0x2000, scoped, tag = 'output window, operand 0, single buffered']
    #allocation3 [shape = 's32[1]{0}', space=sflag, size = 0x4, scoped, tag = 'scoped memory for encoder_sublayer.1']
    %19 = vsyncpa [#allocation3], 0
    // Predicated region
    $region2: #{encoder_sublayer.1} parent=1 // pred_check
      _
    $region3: #{encoder_sublayer.1} parent=1 // pred_check_branch
      %21 = sbr.rel (0) target = $region5
    $region4: #{encoder_sublayer.1} parent=1 // pred_region
      _
    $region5: #{encoder_sublayer.1} parent=1 // pred_fallthru
      _
    // Predicated region
    $region6: #{encoder_sublayer.1} parent=1 // pred_check
      _
    $region7: #{encoder_sublayer.1} parent=1 // pred_check_branch
      %23 = sbr.rel (0) target = $region9
    $region8: #{encoder_sublayer.1} parent=1 // pred_region
      _
    $region9: #{encoder_sublayer.1} parent=1 // pred_fallthru
      _
    // Predicated region
    $region10: #{encoder_sublayer.1} parent=1 // pred_check
      _
    $region11: #{encoder_sublayer.1} parent=1 // pred_check_branch
      %25 = sbr.rel (0) target = $region13
    $region12: #{encoder_sublayer.1} parent=1 // pred_region
      _
    $region13: #{encoder_sublayer.1} parent=1 // pred_fallthru
      _
    // Predicated region
    $region14: #{encoder_sublayer.1} parent=1 // pred_check
      _
    $region15: #{encoder_sublayer.1} parent=1 // pred_check_branch
      %27 = sbr.rel (0) target = $region17
    $region16: #{encoder_sublayer.1} parent=1 // pred_region
      _
    $region17: #{encoder_sublayer.1} parent=1 // pred_fallthru
      _
    // Predicated region
    $region18: #{encoder_sublayer.1} parent=1 // pred_check
      _
    $region19: #{encoder_sublayer.1} parent=1 // pred_check_branch
      %29 = sbr.rel (0) target = $region21
    $region20: #{encoder_sublayer.1} parent=1 // pred_region
      _
    $region21: #{encoder_sublayer.1} parent=1 // pred_fallthru
      _
    // Predicated region
    $region22: #{encoder_sublayer.1} parent=1 // pred_check
      _
    $region23: #{encoder_sublayer.1} parent=1 // pred_check_branch
      %31 = sbr.rel (0) target = $region25
    $region24: #{encoder_sublayer.1} parent=1 // pred_region
      _
    $region25: #{encoder_sublayer.1} parent=1 // pred_fallthru
      _
    // Predicated region
    $region26: #{encoder_sublayer.1} parent=1 // pred_check
      _
    $region27: #{encoder_sublayer.1} parent=1 // pred_check_branch
      %33 = sbr.rel (0) target = $region29
    $region28: #{encoder_sublayer.1} parent=1 // pred_region
      _
    $region29: #{encoder_sublayer.1} parent=1 // pred_fallthru
      _
    // Predicated region
    $region30: #{encoder_sublayer.1} parent=1 // pred_check
      _
    $region31: #{encoder_sublayer.1} parent=1 // pred_check_branch
      %35 = sbr.rel (0) target = $region33
    $region32: #{encoder_sublayer.1} parent=1 // pred_region
      _
    $region33: #{encoder_sublayer.1} parent=1 // pred_fallthru
      _
    // Predicated region
    $region34: #{encoder_sublayer.1} parent=1 // pred_check
      _
    $region35: #{encoder_sublayer.1} parent=1 // pred_check_branch
      %37 = sbr.rel (0) target = $region37
    $region36: #{encoder_sublayer.1} parent=1 // pred_region
      _
    $region37: #{encoder_sublayer.1} parent=1 // pred_fallthru
      _
    // Predicated region
    $region38: #{encoder_sublayer.1} parent=1 // pred_check
      _
    $region39: #{encoder_sublayer.1} parent=1 // pred_check_branch
      %39 = sbr.rel (0) target = $region41
    $region40: #{encoder_sublayer.1} parent=1 // pred_region
      _
    $region41: #{encoder_sublayer.1} parent=1 // pred_fallthru
      _
    // Predicated region
    $region42: #{encoder_sublayer.1} parent=1 // pred_check
      _
    $region43: #{encoder_sublayer.1} parent=1 // pred_check_branch
      %41 = sbr.rel (0) target = $region45
    $region44: #{encoder_sublayer.1} parent=1 // pred_region
      _
    $region45: #{encoder_sublayer.1} parent=1 // pred_fallthru
      _
    // Predicated region
    $region46: #{encoder_sublayer.1} parent=1 // pred_check
      _
    $region47: #{encoder_sublayer.1} parent=1 // pred_check_branch
      %43 = sbr.rel (0) target = $region49
    $region48: #{encoder_sublayer.1} parent=1 // pred_region
      _
    $region49: #{encoder_sublayer.1} parent=1 // pred_fallthru
      _
    // Predicated region
    $region50: #{encoder_sublayer.1} parent=1 // pred_check
      _
    $region51: #{encoder_sublayer.1} parent=1 // pred_check_branch
      %45 = sbr.rel (0) target = $region53
    $region52: #{encoder_sublayer.1} parent=1 // pred_region
      _
    $region53: #{encoder_sublayer.1} parent=1 // pred_fallthru
      _
    // Predicated region
    $region54: #{encoder_sublayer.1} parent=1 // pred_check
      _
    $region55: #{encoder_sublayer.1} parent=1 // pred_check_branch
      %47 = sbr.rel (0) target = $region57
    $region56: #{encoder_sublayer.1} parent=1 // pred_region
      _
    $region57: #{encoder_sublayer.1} parent=1 // pred_fallthru
      _
    %v48 = vld [vmem:[%s0] sm:$0xff]
    %v49 = vld [vmem:[%s0 + $0x8] sm:$0xff]
    %v50 = vld [vmem:[%s2] sm:$0x1]
    %v51 = vld [vmem:[%s3] sm:$0x1]
    %vm52 = vcmask 261120
    %v53 = vsel %vm52, %v48, 0.0
    %54 = vadd.xlane.f32.xlu0 %v53
    %v55 = vpop.xlane.xlu0 %54
    %v56 = vsel %vm52, %v49, 0.0
    %57 = vadd.xlane.f32.xlu0 %v56
    %v58 = vpop.xlane.xlu0 %57
    %v59 = vrcp.pop 32.0
    %v60 = vmul.f32 %v55, %v59
    %v61 = vmul.f32 %v58, %v59
    %v62 = vsub.f32 %v48, %v60
    %v63 = vsub.f32 %v49, %v61
    %v64 = vmul.f32 %v62, %v62
    %v65 = vmul.f32 %v63, %v63
    %v66 = vsel %vm52, %v64, 0.0
    %67 = vadd.xlane.f32.xlu0 %v66
    %v68 = vpop.xlane.xlu0 %67
    %v69 = vsel %vm52, %v65, 0.0
    %70 = vadd.xlane.f32.xlu0 %v69
    %v71 = vpop.xlane.xlu0 %70
    %v72 = vmul.f32 %v68, 0.032258064
    %v73 = vmul.f32 %v71, 0.032258064
    %v75 = vlaneseq
    %v76 = vshrl.u32 %v75, 7
    %v77 = vsub.s32 0, %v76
    %v78 = vrot.slane %v50, %v77
    %v80 = vmul.f32 %v78, %v62
    %v81 = vmul.f32 %v78, %v63
    %v82 = vrsqrt.pop %v72
    %v83 = vmul.f32 %v72, %v82
    %vm84 = vcmp.eq.f32.partialorder %v72, inf
    %v85 = vsel %vm84, %v72, %v83
    %vm86 = vcmp.eq.f32.partialorder %v72, 0.0
    %v87 = vand.u32 %v72, 2147483648
    %v88 = vsel %vm86, %v87, %v85
    %v89 = vrsqrt.pop %v73
    %v90 = vmul.f32 %v73, %v89
    %vm91 = vcmp.eq.f32.partialorder %v73, inf
    %v92 = vsel %vm91, %v73, %v90
    %vm93 = vcmp.eq.f32.partialorder %v73, 0.0
    %v94 = vand.u32 %v73, 2147483648
    %v95 = vsel %vm93, %v94, %v92
    %v96 = vadd.f32 %v88, 1e-06
    %v97 = vadd.f32 %v95, 1e-06
    %v98 = vrcp.pop %v96
    %v99 = vmul.f32 %v80, %v98
    %v100 = vrcp.pop %v97
    %v101 = vmul.f32 %v81, %v100
    %v103 = vlaneseq
    %v104 = vshrl.u32 %v103, 7
    %v105 = vsub.s32 0, %v104
    %v106 = vrot.slane %v51, %v105
    %v108 = vadd.f32 %v99, %v106
    %v109 = vadd.f32 %v101, %v106
    %v110 = vld [vmem:[%s4] sm:$0xff]
    %v111 = vld [vmem:[%s4 + $0x8] sm:$0xff]
    %v112 = vld [vmem:[%s4 + $0x10] sm:$0xff]
    %v113 = vld [vmem:[%s4 + $0x18] sm:$0xff]
    %v114 = vld [vmem:[%s5] sm:$0x1]
    %v116 = vlaneseq
    %v117 = vshrl.u32 %v116, 7
    %v118 = vsub.s32 0, %v117
    %v119 = vrot.slane %v114, %v118
    %v122 = vsel %vm52, %v108, 0
    %v125 = vsel %vm52, %v109, 0
    %127 = vmatprep.subr.mxu0 0.0
    %128 = vmatpush1.msra.mxu0 %v110
    %129 = vmatprep.subr.mxu0 0.0
    %130 = vmatpush1.msra.mxu0 %v111
    %131 = vmatprep.subr.mxu0 0.0
    %132 = vmatpush1.msra.mxu0 %v112
    %133 = vmatprep.subr.mxu0 0.0
    %134 = vmatpush1.msra.mxu0 %v113
    %135 = vmatprep.subr.mxu0 0.0
    %136 = vmatpush1.msra.mxu0 0.0
    %137 = vmatprep.subr.mxu0 0.0
    %138 = vmatpush1.msra.mxu0 0.0
    %139 = vmatprep.subr.mxu0 0.0
    %140 = vmatpush1.msra.mxu0 0.0
    %141 = vmatprep.subr.mxu0 0.0
    %142 = vmatpush1.msra.mxu0 0.0
    %143 = vmatprep.subr.mxu0 0.0
    %144 = vmatpush1.msra.mxu0 0.0
    %145 = vmatprep.subr.mxu0 0.0
    %146 = vmatpush1.msra.mxu0 0.0
    %147 = vmatprep.subr.mxu0 0.0
    %148 = vmatpush1.msra.mxu0 0.0
    %149 = vmatprep.subr.mxu0 0.0
    %150 = vmatpush1.msra.mxu0 0.0
    %151 = vmatprep.subr.mxu0 0.0
    %152 = vmatpush1.msra.mxu0 0.0
    %153 = vmatprep.subr.mxu0 0.0
    %154 = vmatpush1.msra.mxu0 0.0
    %155 = vmatprep.subr.mxu0 0.0
    %156 = vmatpush1.msra.mxu0 0.0
    %157 = vmatprep.subr.mxu0 0.0
    %158 = vmatpush1.msra.mxu0 0.0
    %159 = vmatprep.subr.mxu0 0.0
    %160 = vmatpush1.msra.mxu0 0.0
    %161 = vmatprep.subr.mxu0 0.0
    %162 = vmatpush1.msra.mxu0 0.0
    %163 = vmatprep.subr.mxu0 0.0
    %164 = vmatpush1.msra.mxu0 0.0
    %165 = vmatprep.subr.mxu0 0.0
    %166 = vmatpush1.msra.mxu0 0.0
    %167 = vmatprep.subr.mxu0 0.0
    %168 = vmatpush1.msra.mxu0 0.0
    %169 = vmatprep.subr.mxu0 0.0
    %170 = vmatpush1.msra.mxu0 0.0
    %171 = vmatprep.subr.mxu0 0.0
    %172 = vmatpush1.msra.mxu0 0.0
    %173 = vmatprep.subr.mxu0 0.0
    %174 = vmatpush1.msra.mxu0 0.0
    %175 = vmatprep.subr.mxu0 0.0
    %176 = vmatpush1.msra.mxu0 0.0
    %177 = vmatprep.subr.mxu0 0.0
    %178 = vmatpush1.msra.mxu0 0.0
    %179 = vmatprep.subr.mxu0 0.0
    %180 = vmatpush1.msra.mxu0 0.0
    %181 = vmatprep.subr.mxu0 0.0
    %182 = vmatpush1.msra.mxu0 0.0
    %183 = vmatprep.subr.mxu0 0.0
    %184 = vmatpush1.msra.mxu0 0.0
    %185 = vmatprep.subr.mxu0 0.0
    %186 = vmatpush1.msra.mxu0 0.0
    %187 = vmatprep.subr.mxu0 0.0
    %188 = vmatpush1.msra.mxu0 0.0
    %189 = vmatprep.subr.mxu0 0.0
    %190 = vmatpush1.msra.mxu0 0.0
    %191 = vmatprep.mubr.f32.mxu0 0.0
    %192 = vmatmul.mubr.f32.gmra.mrb[0].mxu0 %v122
    %v193 = vpop.f32.mrb[0].mxu0
    %v194 = vadd.f32 %v119, %v193
    %v195 = vpop.f32.mrb[0].mxu0
    %196 = vmatprep.mubr.f32.mxu0 0.0
    %197 = vmatmul.mubr.f32.gmra.mrb[0].mxu0 %v125
    %v198 = vpop.f32.mrb[0].mxu0
    %v199 = vadd.f32 %v119, %v198
    %v200 = vpop.f32.mrb[0].mxu0
    %201 = vdwg.mxu0
    %v202 = vld [vmem:[%s1] sm:$0xff]
    %v203 = vld [vmem:[%s1 + $0x8] sm:$0xff]
    %206 = vrot.lane.b32.xlu0 %v194, 96
    %v207 = vpop.permute.xlu0 %206
    %208 = vrot.lane.b32.xlu0 %v199, 96
    %v209 = vpop.permute.xlu0 %208
    %vm210 = vcmask 64512
    %v211 = vsel %vm210, %v194, 0
    %v213 = vsel %vm210, %v199, 0
    %v215 = vsel %vm210, %v207, 0
    %v217 = vsel %vm210, %v209, 0
    %219 = vmatprep.subr.mxu0 0.0
    %220 = vmatpush1.xpose.msra.mxu0 %v215
    %221 = vmatprep.subr.mxu0 0.0
    %222 = vmatpush1.xpose.msra.mxu0 %v217
    %223 = vmatprep.subr.mxu0 0.0
    %224 = vmatpush1.xpose.msra.mxu0 0.0
    %225 = vmatprep.subr.mxu0 0.0
    %226 = vmatpush1.xpose.msra.mxu0 0.0
    %227 = vmatprep.subr.mxu0 0.0
    %228 = vmatpush1.xpose.msra.mxu0 0.0
    %229 = vmatprep.subr.mxu0 0.0
    %230 = vmatpush1.xpose.msra.mxu0 0.0
    %231 = vmatprep.subr.mxu0 0.0
    %232 = vmatpush1.xpose.msra.mxu0 0.0
    %233 = vmatprep.subr.mxu0 0.0
    %234 = vmatpush1.xpose.msra.mxu0 0.0
    %235 = vmatprep.subr.mxu0 0.0
    %236 = vmatpush1.xpose.msra.mxu0 0.0
    %237 = vmatprep.subr.mxu0 0.0
    %238 = vmatpush1.xpose.msra.mxu0 0.0
    %239 = vmatprep.subr.mxu0 0.0
    %240 = vmatpush1.xpose.msra.mxu0 0.0
    %241 = vmatprep.subr.mxu0 0.0
    %242 = vmatpush1.xpose.msra.mxu0 0.0
    %243 = vmatprep.subr.mxu0 0.0
    %244 = vmatpush1.xpose.msra.mxu0 0.0
    %245 = vmatprep.subr.mxu0 0.0
    %246 = vmatpush1.xpose.msra.mxu0 0.0
    %247 = vmatprep.subr.mxu0 0.0
    %248 = vmatpush1.xpose.msra.mxu0 0.0
    %249 = vmatprep.subr.mxu0 0.0
    %250 = vmatpush1.xpose.msra.mxu0 0.0
    %251 = vmatprep.subr.mxu0 0.0
    %252 = vmatpush1.xpose.msra.mxu0 0.0
    %253 = vmatprep.subr.mxu0 0.0
    %254 = vmatpush1.xpose.msra.mxu0 0.0
    %255 = vmatprep.subr.mxu0 0.0
    %256 = vmatpush1.xpose.msra.mxu0 0.0
    %257 = vmatprep.subr.mxu0 0.0
    %258 = vmatpush1.xpose.msra.mxu0 0.0
    %259 = vmatprep.subr.mxu0 0.0
    %260 = vmatpush1.xpose.msra.mxu0 0.0
    %261 = vmatprep.subr.mxu0 0.0
    %262 = vmatpush1.xpose.msra.mxu0 0.0
    %263 = vmatprep.subr.mxu0 0.0
    %264 = vmatpush1.xpose.msra.mxu0 0.0
    %265 = vmatprep.subr.mxu0 0.0
    %266 = vmatpush1.xpose.msra.mxu0 0.0
    %267 = vmatprep.subr.mxu0 0.0
    %268 = vmatpush1.xpose.msra.mxu0 0.0
    %269 = vmatprep.subr.mxu0 0.0
    %270 = vmatpush1.xpose.msra.mxu0 0.0
    %271 = vmatprep.subr.mxu0 0.0
    %272 = vmatpush1.xpose.msra.mxu0 0.0
    %273 = vmatprep.subr.mxu0 0.0
    %274 = vmatpush1.xpose.msra.mxu0 0.0
    %275 = vmatprep.subr.mxu0 0.0
    %276 = vmatpush1.xpose.msra.mxu0 0.0
    %277 = vmatprep.subr.mxu0 0.0
    %278 = vmatpush1.xpose.msra.mxu0 0.0
    %279 = vmatprep.subr.mxu0 0.0
    %280 = vmatpush1.xpose.msra.mxu0 0.0
    %281 = vmatprep.subr.mxu0 0.0
    %282 = vmatpush1.xpose.msra.mxu0 0.0
    %283 = vmatprep.mubr.f32.mxu0 0.0
    %284 = vmatmul.mubr.f32.gmra.mrb[0].mxu0 %v211
    %v285 = vpop.f32.mrb[0].mxu0
    %v286 = vadd.f32 0.0, %v285
    %v287 = vpop.f32.mrb[0].mxu0
    %288 = vmatprep.mubr.f32.mxu0 0.0
    %289 = vmatmul.mubr.f32.gmra.mrb[0].mxu0 %v213
    %v290 = vpop.f32.mrb[0].mxu0
    %v291 = vadd.f32 0.0, %v290
    %v292 = vpop.f32.mrb[0].mxu0
    %293 = vdwg.mxu0
    %v294 = vmul.f32 %v286, 0.35355338
    %v295 = vmul.f32 %v291, 0.35355338
    %v296 = vadd.f32 %v294, %v202
    %v297 = vadd.f32 %v295, %v203
    %vm298 = vcmask 130048
    %v299 = vsel %vm298, %v296, -inf
    %300 = vmax.xlane.f32.xlu0 %v299
    %v301 = vpop.xlane.xlu0 %300
    %v302 = vsel %vm298, %v297, -inf
    %303 = vmax.xlane.f32.xlu0 %v302
    %v304 = vpop.xlane.xlu0 %303
    %v305 = vsub.f32 %v296, %v301
    %v306 = vsub.f32 %v297, %v304
    %v307 = vmul.f32 %v305, 1.442695
    %v308 = vpow.pop %v307
    %v309 = vmul.f32 %v306, 1.442695
    %v310 = vpow.pop %v309
    %v311 = vsel %vm298, %v308, 0.0
    %312 = vadd.xlane.f32.xlu0 %v311
    %v313 = vpop.xlane.xlu0 %312
    %v314 = vsel %vm298, %v310, 0.0
    %315 = vadd.xlane.f32.xlu0 %v314
    %v316 = vpop.xlane.xlu0 %315
    %v317 = vrcp.pop %v313
    %v318 = vmul.f32 %v308, %v317
    %v319 = vrcp.pop %v316
    %v320 = vmul.f32 %v310, %v319
    %321 = vrot.lane.b32.xlu0 %v194, 64
    %v322 = vpop.permute.xlu0 %321
    %323 = vrot.lane.b32.xlu0 %v199, 64
    %v324 = vpop.permute.xlu0 %323
    %v328 = vsel %vm298, %v318, 0
    %v331 = vsel %vm298, %v320, 0
    %333 = vmatprep.subr.mxu0 0.0
    %334 = vmatpush1.msra.mxu0 %v322
    %335 = vmatprep.subr.mxu0 0.0
    %336 = vmatpush1.msra.mxu0 %v324
    %337 = vmatprep.subr.mxu0 0.0
    %338 = vmatpush1.msra.mxu0 0.0
    %339 = vmatprep.subr.mxu0 0.0
    %340 = vmatpush1.msra.mxu0 0.0
    %341 = vmatprep.subr.mxu0 0.0
    %342 = vmatpush1.msra.mxu0 0.0
    %343 = vmatprep.subr.mxu0 0.0
    %344 = vmatpush1.msra.mxu0 0.0
    %345 = vmatprep.subr.mxu0 0.0
    %346 = vmatpush1.msra.mxu0 0.0
    %347 = vmatprep.subr.mxu0 0.0
    %348 = vmatpush1.msra.mxu0 0.0
    %349 = vmatprep.subr.mxu0 0.0
    %350 = vmatpush1.msra.mxu0 0.0
    %351 = vmatprep.subr.mxu0 0.0
    %352 = vmatpush1.msra.mxu0 0.0
    %353 = vmatprep.subr.mxu0 0.0
    %354 = vmatpush1.msra.mxu0 0.0
    %355 = vmatprep.subr.mxu0 0.0
    %356 = vmatpush1.msra.mxu0 0.0
    %357 = vmatprep.subr.mxu0 0.0
    %358 = vmatpush1.msra.mxu0 0.0
    %359 = vmatprep.subr.mxu0 0.0
    %360 = vmatpush1.msra.mxu0 0.0
    %361 = vmatprep.subr.mxu0 0.0
    %362 = vmatpush1.msra.mxu0 0.0
    %363 = vmatprep.subr.mxu0 0.0
    %364 = vmatpush1.msra.mxu0 0.0
    %365 = vmatprep.subr.mxu0 0.0
    %366 = vmatpush1.msra.mxu0 0.0
    %367 = vmatprep.subr.mxu0 0.0
    %368 = vmatpush1.msra.mxu0 0.0
    %369 = vmatprep.subr.mxu0 0.0
    %370 = vmatpush1.msra.mxu0 0.0
    %371 = vmatprep.subr.mxu0 0.0
    %372 = vmatpush1.msra.mxu0 0.0
    %373 = vmatprep.subr.mxu0 0.0
    %374 = vmatpush1.msra.mxu0 0.0
    %375 = vmatprep.subr.mxu0 0.0
    %376 = vmatpush1.msra.mxu0 0.0
    %377 = vmatprep.subr.mxu0 0.0
    %378 = vmatpush1.msra.mxu0 0.0
    %379 = vmatprep.subr.mxu0 0.0
    %380 = vmatpush1.msra.mxu0 0.0
    %381 = vmatprep.subr.mxu0 0.0
    %382 = vmatpush1.msra.mxu0 0.0
    %383 = vmatprep.subr.mxu0 0.0
    %384 = vmatpush1.msra.mxu0 0.0
    %385 = vmatprep.subr.mxu0 0.0
    %386 = vmatpush1.msra.mxu0 0.0
    %387 = vmatprep.subr.mxu0 0.0
    %388 = vmatpush1.msra.mxu0 0.0
    %389 = vmatprep.subr.mxu0 0.0
    %390 = vmatpush1.msra.mxu0 0.0
    %391 = vmatprep.subr.mxu0 0.0
    %392 = vmatpush1.msra.mxu0 0.0
    %393 = vmatprep.subr.mxu0 0.0
    %394 = vmatpush1.msra.mxu0 0.0
    %395 = vmatprep.subr.mxu0 0.0
    %396 = vmatpush1.msra.mxu0 0.0
    %397 = vmatprep.mubr.f32.mxu0 0.0
    %398 = vmatmul.mubr.f32.gmra.mrb[0].mxu0 %v328
    %v399 = vpop.f32.mrb[0].mxu0
    %v400 = vadd.f32 0.0, %v399
    %v401 = vpop.f32.mrb[0].mxu0
    %402 = vmatprep.mubr.f32.mxu0 0.0
    %403 = vmatmul.mubr.f32.gmra.mrb[0].mxu0 %v331
    %v404 = vpop.f32.mrb[0].mxu0
    %v405 = vadd.f32 0.0, %v404
    %v406 = vpop.f32.mrb[0].mxu0
    %407 = vdwg.mxu0
    %v408 = vld [vmem:[%s6] sm:$0xff]
    %409 = vrot.lane.b32.xlu0 %v194, 120
    %v410 = vpop.permute.xlu0 %409
    %411 = vrot.lane.b32.xlu0 %v199, 120
    %v412 = vpop.permute.xlu0 %411
    %413 = vrot.lane.b32.xlu0 %v194, 88
    %v414 = vpop.permute.xlu0 %413
    %415 = vrot.lane.b32.xlu0 %v199, 88
    %v416 = vpop.permute.xlu0 %415
    %v417 = vsel %vm210, %v410, 0
    %v419 = vsel %vm210, %v412, 0
    %v421 = vsel %vm210, %v414, 0
    %v423 = vsel %vm210, %v416, 0
    %425 = vmatprep.subr.mxu0 0.0
    %426 = vmatpush1.xpose.msra.mxu0 %v421
    %427 = vmatprep.subr.mxu0 0.0
    %428 = vmatpush1.xpose.msra.mxu0 %v423
    %429 = vmatprep.subr.mxu0 0.0
    %430 = vmatpush1.xpose.msra.mxu0 0.0
    %431 = vmatprep.subr.mxu0 0.0
    %432 = vmatpush1.xpose.msra.mxu0 0.0
    %433 = vmatprep.subr.mxu0 0.0
    %434 = vmatpush1.xpose.msra.mxu0 0.0
    %435 = vmatprep.subr.mxu0 0.0
    %436 = vmatpush1.xpose.msra.mxu0 0.0
    %437 = vmatprep.subr.mxu0 0.0
    %438 = vmatpush1.xpose.msra.mxu0 0.0
    %439 = vmatprep.subr.mxu0 0.0
    %440 = vmatpush1.xpose.msra.mxu0 0.0
    %441 = vmatprep.subr.mxu0 0.0
    %442 = vmatpush1.xpose.msra.mxu0 0.0
    %443 = vmatprep.subr.mxu0 0.0
    %444 = vmatpush1.xpose.msra.mxu0 0.0
    %445 = vmatprep.subr.mxu0 0.0
    %446 = vmatpush1.xpose.msra.mxu0 0.0
    %447 = vmatprep.subr.mxu0 0.0
    %448 = vmatpush1.xpose.msra.mxu0 0.0
    %449 = vmatprep.subr.mxu0 0.0
    %450 = vmatpush1.xpose.msra.mxu0 0.0
    %451 = vmatprep.subr.mxu0 0.0
    %452 = vmatpush1.xpose.msra.mxu0 0.0
    %453 = vmatprep.subr.mxu0 0.0
    %454 = vmatpush1.xpose.msra.mxu0 0.0
    %455 = vmatprep.subr.mxu0 0.0
    %456 = vmatpush1.xpose.msra.mxu0 0.0
    %457 = vmatprep.subr.mxu0 0.0
    %458 = vmatpush1.xpose.msra.mxu0 0.0
    %459 = vmatprep.subr.mxu0 0.0
    %460 = vmatpush1.xpose.msra.mxu0 0.0
    %461 = vmatprep.subr.mxu0 0.0
    %462 = vmatpush1.xpose.msra.mxu0 0.0
    %463 = vmatprep.subr.mxu0 0.0
    %464 = vmatpush1.xpose.msra.mxu0 0.0
    %465 = vmatprep.subr.mxu0 0.0
    %466 = vmatpush1.xpose.msra.mxu0 0.0
    %467 = vmatprep.subr.mxu0 0.0
    %468 = vmatpush1.xpose.msra.mxu0 0.0
    %469 = vmatprep.subr.mxu0 0.0
    %470 = vmatpush1.xpose.msra.mxu0 0.0
    %471 = vmatprep.subr.mxu0 0.0
    %472 = vmatpush1.xpose.msra.mxu0 0.0
    %473 = vmatprep.subr.mxu0 0.0
    %474 = vmatpush1.xpose.msra.mxu0 0.0
    %475 = vmatprep.subr.mxu0 0.0
    %476 = vmatpush1.xpose.msra.mxu0 0.0
    %477 = vmatprep.subr.mxu0 0.0
    %478 = vmatpush1.xpose.msra.mxu0 0.0
    %479 = vmatprep.subr.mxu0 0.0
    %480 = vmatpush1.xpose.msra.mxu0 0.0
    %481 = vmatprep.subr.mxu0 0.0
    %482 = vmatpush1.xpose.msra.mxu0 0.0
    %483 = vmatprep.subr.mxu0 0.0
    %484 = vmatpush1.xpose.msra.mxu0 0.0
    %485 = vmatprep.subr.mxu0 0.0
    %486 = vmatpush1.xpose.msra.mxu0 0.0
    %487 = vmatprep.subr.mxu0 0.0
    %488 = vmatpush1.xpose.msra.mxu0 0.0
    %489 = vmatprep.mubr.f32.mxu0 0.0
    %490 = vmatmul.mubr.f32.gmra.mrb[0].mxu0 %v417
    %v491 = vpop.f32.mrb[0].mxu0
    %v492 = vadd.f32 0.0, %v491
    %v493 = vpop.f32.mrb[0].mxu0
    %494 = vmatprep.mubr.f32.mxu0 0.0
    %495 = vmatmul.mubr.f32.gmra.mrb[0].mxu0 %v419
    %v496 = vpop.f32.mrb[0].mxu0
    %v497 = vadd.f32 0.0, %v496
    %v498 = vpop.f32.mrb[0].mxu0
    %499 = vdwg.mxu0
    %v500 = vmul.f32 %v492, 0.35355338
    %v501 = vmul.f32 %v497, 0.35355338
    %v502 = vadd.f32 %v500, %v202
    %v503 = vadd.f32 %v501, %v203
    %v504 = vsel %vm298, %v502, -inf
    %505 = vmax.xlane.f32.xlu0 %v504
    %v506 = vpop.xlane.xlu0 %505
    %v507 = vsel %vm298, %v503, -inf
    %508 = vmax.xlane.f32.xlu0 %v507
    %v509 = vpop.xlane.xlu0 %508
    %v510 = vsub.f32 %v502, %v506
    %v511 = vsub.f32 %v503, %v509
    %v512 = vmul.f32 %v510, 1.442695
    %v513 = vpow.pop %v512
    %v514 = vmul.f32 %v511, 1.442695
    %v515 = vpow.pop %v514
    %v516 = vsel %vm298, %v513, 0.0
    %517 = vadd.xlane.f32.xlu0 %v516
    %v518 = vpop.xlane.xlu0 %517
    %v519 = vsel %vm298, %v515, 0.0
    %520 = vadd.xlane.f32.xlu0 %v519
    %v521 = vpop.xlane.xlu0 %520
    %v522 = vrcp.pop %v518
    %v523 = vmul.f32 %v513, %v522
    %v524 = vrcp.pop %v521
    %v525 = vmul.f32 %v515, %v524
    %526 = vrot.lane.b32.xlu0 %v194, 56
    %v527 = vpop.permute.xlu0 %526
    %528 = vrot.lane.b32.xlu0 %v199, 56
    %v529 = vpop.permute.xlu0 %528
    %v533 = vsel %vm298, %v523, 0
    %v536 = vsel %vm298, %v525, 0
    %538 = vmatprep.subr.mxu0 0.0
    %539 = vmatpush1.msra.mxu0 %v527
    %540 = vmatprep.subr.mxu0 0.0
    %541 = vmatpush1.msra.mxu0 %v529
    %542 = vmatprep.subr.mxu0 0.0
    %543 = vmatpush1.msra.mxu0 0.0
    %544 = vmatprep.subr.mxu0 0.0
    %545 = vmatpush1.msra.mxu0 0.0
    %546 = vmatprep.subr.mxu0 0.0
    %547 = vmatpush1.msra.mxu0 0.0
    %548 = vmatprep.subr.mxu0 0.0
    %549 = vmatpush1.msra.mxu0 0.0
    %550 = vmatprep.subr.mxu0 0.0
    %551 = vmatpush1.msra.mxu0 0.0
    %552 = vmatprep.subr.mxu0 0.0
    %553 = vmatpush1.msra.mxu0 0.0
    %554 = vmatprep.subr.mxu0 0.0
    %555 = vmatpush1.msra.mxu0 0.0
    %556 = vmatprep.subr.mxu0 0.0
    %557 = vmatpush1.msra.mxu0 0.0
    %558 = vmatprep.subr.mxu0 0.0
    %559 = vmatpush1.msra.mxu0 0.0
    %560 = vmatprep.subr.mxu0 0.0
    %561 = vmatpush1.msra.mxu0 0.0
    %562 = vmatprep.subr.mxu0 0.0
    %563 = vmatpush1.msra.mxu0 0.0
    %564 = vmatprep.subr.mxu0 0.0
    %565 = vmatpush1.msra.mxu0 0.0
    %566 = vmatprep.subr.mxu0 0.0
    %567 = vmatpush1.msra.mxu0 0.0
    %568 = vmatprep.subr.mxu0 0.0
    %569 = vmatpush1.msra.mxu0 0.0
    %570 = vmatprep.subr.mxu0 0.0
    %571 = vmatpush1.msra.mxu0 0.0
    %572 = vmatprep.subr.mxu0 0.0
    %573 = vmatpush1.msra.mxu0 0.0
    %574 = vmatprep.subr.mxu0 0.0
    %575 = vmatpush1.msra.mxu0 0.0
    %576 = vmatprep.subr.mxu0 0.0
    %577 = vmatpush1.msra.mxu0 0.0
    %578 = vmatprep.subr.mxu0 0.0
    %579 = vmatpush1.msra.mxu0 0.0
    %580 = vmatprep.subr.mxu0 0.0
    %581 = vmatpush1.msra.mxu0 0.0
    %582 = vmatprep.subr.mxu0 0.0
    %583 = vmatpush1.msra.mxu0 0.0
    %584 = vmatprep.subr.mxu0 0.0
    %585 = vmatpush1.msra.mxu0 0.0
    %586 = vmatprep.subr.mxu0 0.0
    %587 = vmatpush1.msra.mxu0 0.0
    %588 = vmatprep.subr.mxu0 0.0
    %589 = vmatpush1.msra.mxu0 0.0
    %590 = vmatprep.subr.mxu0 0.0
    %591 = vmatpush1.msra.mxu0 0.0
    %592 = vmatprep.subr.mxu0 0.0
    %593 = vmatpush1.msra.mxu0 0.0
    %594 = vmatprep.subr.mxu0 0.0
    %595 = vmatpush1.msra.mxu0 0.0
    %596 = vmatprep.subr.mxu0 0.0
    %597 = vmatpush1.msra.mxu0 0.0
    %598 = vmatprep.subr.mxu0 0.0
    %599 = vmatpush1.msra.mxu0 0.0
    %600 = vmatprep.subr.mxu0 0.0
    %601 = vmatpush1.msra.mxu0 0.0
    %602 = vmatprep.mubr.f32.mxu0 0.0
    %603 = vmatmul.mubr.f32.gmra.mrb[0].mxu0 %v533
    %v604 = vpop.f32.mrb[0].mxu0
    %v605 = vadd.f32 0.0, %v604
    %v606 = vpop.f32.mrb[0].mxu0
    %607 = vmatprep.mubr.f32.mxu0 0.0
    %608 = vmatmul.mubr.f32.gmra.mrb[0].mxu0 %v536
    %v609 = vpop.f32.mrb[0].mxu0
    %v610 = vadd.f32 0.0, %v609
    %v611 = vpop.f32.mrb[0].mxu0
    %612 = vdwg.mxu0
    %v613 = vld [vmem:[%s6 + $0x8] sm:$0xff]
    %v615 = vsel %vm210, %v605, 0
    %v618 = vsel %vm210, %v610, 0
    %620 = vmatprep.subr.mxu0 0.0
    %621 = vmatpush1.msra.mxu0 %v613
    %622 = vmatprep.subr.mxu0 0.0
    %623 = vmatpush1.msra.mxu0 0.0
    %624 = vmatprep.subr.mxu0 0.0
    %625 = vmatpush1.msra.mxu0 0.0
    %626 = vmatprep.subr.mxu0 0.0
    %627 = vmatpush1.msra.mxu0 0.0
    %628 = vmatprep.subr.mxu0 0.0
    %629 = vmatpush1.msra.mxu0 0.0
    %630 = vmatprep.subr.mxu0 0.0
    %631 = vmatpush1.msra.mxu0 0.0
    %632 = vmatprep.subr.mxu0 0.0
    %633 = vmatpush1.msra.mxu0 0.0
    %634 = vmatprep.subr.mxu0 0.0
    %635 = vmatpush1.msra.mxu0 0.0
    %636 = vmatprep.subr.mxu0 0.0
    %637 = vmatpush1.msra.mxu0 0.0
    %638 = vmatprep.subr.mxu0 0.0
    %639 = vmatpush1.msra.mxu0 0.0
    %640 = vmatprep.subr.mxu0 0.0
    %641 = vmatpush1.msra.mxu0 0.0
    %642 = vmatprep.subr.mxu0 0.0
    %643 = vmatpush1.msra.mxu0 0.0
    %644 = vmatprep.subr.mxu0 0.0
    %645 = vmatpush1.msra.mxu0 0.0
    %646 = vmatprep.subr.mxu0 0.0
    %647 = vmatpush1.msra.mxu0 0.0
    %648 = vmatprep.subr.mxu0 0.0
    %649 = vmatpush1.msra.mxu0 0.0
    %650 = vmatprep.subr.mxu0 0.0
    %651 = vmatpush1.msra.mxu0 0.0
    %652 = vmatprep.subr.mxu0 0.0
    %653 = vmatpush1.msra.mxu0 0.0
    %654 = vmatprep.subr.mxu0 0.0
    %655 = vmatpush1.msra.mxu0 0.0
    %656 = vmatprep.subr.mxu0 0.0
    %657 = vmatpush1.msra.mxu0 0.0
    %658 = vmatprep.subr.mxu0 0.0
    %659 = vmatpush1.msra.mxu0 0.0
    %660 = vmatprep.subr.mxu0 0.0
    %661 = vmatpush1.msra.mxu0 0.0
    %662 = vmatprep.subr.mxu0 0.0
    %663 = vmatpush1.msra.mxu0 0.0
    %664 = vmatprep.subr.mxu0 0.0
    %665 = vmatpush1.msra.mxu0 0.0
    %666 = vmatprep.subr.mxu0 0.0
    %667 = vmatpush1.msra.mxu0 0.0
    %668 = vmatprep.subr.mxu0 0.0
    %669 = vmatpush1.msra.mxu0 0.0
    %670 = vmatprep.subr.mxu0 0.0
    %671 = vmatpush1.msra.mxu0 0.0
    %672 = vmatprep.subr.mxu0 0.0
    %673 = vmatpush1.msra.mxu0 0.0
    %674 = vmatprep.subr.mxu0 0.0
    %675 = vmatpush1.msra.mxu0 0.0
    %676 = vmatprep.subr.mxu0 0.0
    %677 = vmatpush1.msra.mxu0 0.0
    %678 = vmatprep.subr.mxu0 0.0
    %679 = vmatpush1.msra.mxu0 0.0
    %680 = vmatprep.subr.mxu0 0.0
    %681 = vmatpush1.msra.mxu0 0.0
    %682 = vmatprep.subr.mxu0 0.0
    %683 = vmatpush1.msra.mxu0 0.0
    %684 = vmatprep.mubr.f32.mxu0 0.0
    %685 = vmatmul.mubr.f32.gmra.mrb[0].mxu0 %v615
    %v686 = vpop.f32.mrb[0].mxu0
    %v687 = vadd.f32 0.0, %v686
    %v688 = vpop.f32.mrb[0].mxu0
    %689 = vmatprep.mubr.f32.mxu0 0.0
    %690 = vmatmul.mubr.f32.gmra.mrb[0].mxu0 %v618
    %v691 = vpop.f32.mrb[0].mxu0
    %v692 = vadd.f32 0.0, %v691
    %v693 = vpop.f32.mrb[0].mxu0
    %694 = vdwg.mxu0
    %v696 = vsel %vm210, %v400, 0
    %v699 = vsel %vm210, %v405, 0
    %701 = vmatprep.subr.mxu0 0.0
    %702 = vmatpush1.msra.mxu0 %v408
    %703 = vmatprep.subr.mxu0 0.0
    %704 = vmatpush1.msra.mxu0 0.0
    %705 = vmatprep.subr.mxu0 0.0
    %706 = vmatpush1.msra.mxu0 0.0
    %707 = vmatprep.subr.mxu0 0.0
    %708 = vmatpush1.msra.mxu0 0.0
    %709 = vmatprep.subr.mxu0 0.0
    %710 = vmatpush1.msra.mxu0 0.0
    %711 = vmatprep.subr.mxu0 0.0
    %712 = vmatpush1.msra.mxu0 0.0
    %713 = vmatprep.subr.mxu0 0.0
    %714 = vmatpush1.msra.mxu0 0.0
    %715 = vmatprep.subr.mxu0 0.0
    %716 = vmatpush1.msra.mxu0 0.0
    %717 = vmatprep.subr.mxu0 0.0
    %718 = vmatpush1.msra.mxu0 0.0
    %719 = vmatprep.subr.mxu0 0.0
    %720 = vmatpush1.msra.mxu0 0.0
    %721 = vmatprep.subr.mxu0 0.0
    %722 = vmatpush1.msra.mxu0 0.0
    %723 = vmatprep.subr.mxu0 0.0
    %724 = vmatpush1.msra.mxu0 0.0
    %725 = vmatprep.subr.mxu0 0.0
    %726 = vmatpush1.msra.mxu0 0.0
    %727 = vmatprep.subr.mxu0 0.0
    %728 = vmatpush1.msra.mxu0 0.0
    %729 = vmatprep.subr.mxu0 0.0
    %730 = vmatpush1.msra.mxu0 0.0
    %731 = vmatprep.subr.mxu0 0.0
    %732 = vmatpush1.msra.mxu0 0.0
    %733 = vmatprep.subr.mxu0 0.0
    %734 = vmatpush1.msra.mxu0 0.0
    %735 = vmatprep.subr.mxu0 0.0
    %736 = vmatpush1.msra.mxu0 0.0
    %737 = vmatprep.subr.mxu0 0.0
    %738 = vmatpush1.msra.mxu0 0.0
    %739 = vmatprep.subr.mxu0 0.0
    %740 = vmatpush1.msra.mxu0 0.0
    %741 = vmatprep.subr.mxu0 0.0
    %742 = vmatpush1.msra.mxu0 0.0
    %743 = vmatprep.subr.mxu0 0.0
    %744 = vmatpush1.msra.mxu0 0.0
    %745 = vmatprep.subr.mxu0 0.0
    %746 = vmatpush1.msra.mxu0 0.0
    %747 = vmatprep.subr.mxu0 0.0
    %748 = vmatpush1.msra.mxu0 0.0
    %749 = vmatprep.subr.mxu0 0.0
    %750 = vmatpush1.msra.mxu0 0.0
    %751 = vmatprep.subr.mxu0 0.0
    %752 = vmatpush1.msra.mxu0 0.0
    %753 = vmatprep.subr.mxu0 0.0
    %754 = vmatpush1.msra.mxu0 0.0
    %755 = vmatprep.subr.mxu0 0.0
    %756 = vmatpush1.msra.mxu0 0.0
    %757 = vmatprep.subr.mxu0 0.0
    %758 = vmatpush1.msra.mxu0 0.0
    %759 = vmatprep.subr.mxu0 0.0
    %760 = vmatpush1.msra.mxu0 0.0
    %761 = vmatprep.subr.mxu0 0.0
    %762 = vmatpush1.msra.mxu0 0.0
    %763 = vmatprep.subr.mxu0 0.0
    %764 = vmatpush1.msra.mxu0 0.0
    %765 = vmatprep.mubr.f32.mxu0 0.0
    %766 = vmatmul.mubr.f32.gmra.mrb[0].mxu0 %v696
    %v767 = vpop.f32.mrb[0].mxu0
    %v768 = vadd.f32 %v687, %v767
    %v769 = vpop.f32.mrb[0].mxu0
    %770 = vmatprep.mubr.f32.mxu0 0.0
    %771 = vmatmul.mubr.f32.gmra.mrb[0].mxu0 %v699
    %v772 = vpop.f32.mrb[0].mxu0
    %v773 = vadd.f32 %v692, %v772
    %v774 = vpop.f32.mrb[0].mxu0
    %775 = vdwg.mxu0
    %776 = vrot.lane.b32.xlu0 %v194, 112
    %v777 = vpop.permute.xlu0 %776
    %778 = vrot.lane.b32.xlu0 %v199, 112
    %v779 = vpop.permute.xlu0 %778
    %780 = vrot.lane.b32.xlu0 %v194, 80
    %v781 = vpop.permute.xlu0 %780
    %782 = vrot.lane.b32.xlu0 %v199, 80
    %v783 = vpop.permute.xlu0 %782
    %v784 = vsel %vm210, %v777, 0
    %v786 = vsel %vm210, %v779, 0
    %v788 = vsel %vm210, %v781, 0
    %v790 = vsel %vm210, %v783, 0
    %792 = vmatprep.subr.mxu0 0.0
    %793 = vmatpush1.xpose.msra.mxu0 %v788
    %794 = vmatprep.subr.mxu0 0.0
    %795 = vmatpush1.xpose.msra.mxu0 %v790
    %796 = vmatprep.subr.mxu0 0.0
    %797 = vmatpush1.xpose.msra.mxu0 0.0
    %798 = vmatprep.subr.mxu0 0.0
    %799 = vmatpush1.xpose.msra.mxu0 0.0
    %800 = vmatprep.subr.mxu0 0.0
    %801 = vmatpush1.xpose.msra.mxu0 0.0
    %802 = vmatprep.subr.mxu0 0.0
    %803 = vmatpush1.xpose.msra.mxu0 0.0
    %804 = vmatprep.subr.mxu0 0.0
    %805 = vmatpush1.xpose.msra.mxu0 0.0
    %806 = vmatprep.subr.mxu0 0.0
    %807 = vmatpush1.xpose.msra.mxu0 0.0
    %808 = vmatprep.subr.mxu0 0.0
    %809 = vmatpush1.xpose.msra.mxu0 0.0
    %810 = vmatprep.subr.mxu0 0.0
    %811 = vmatpush1.xpose.msra.mxu0 0.0
    %812 = vmatprep.subr.mxu0 0.0
    %813 = vmatpush1.xpose.msra.mxu0 0.0
    %814 = vmatprep.subr.mxu0 0.0
    %815 = vmatpush1.xpose.msra.mxu0 0.0
    %816 = vmatprep.subr.mxu0 0.0
    %817 = vmatpush1.xpose.msra.mxu0 0.0
    %818 = vmatprep.subr.mxu0 0.0
    %819 = vmatpush1.xpose.msra.mxu0 0.0
    %820 = vmatprep.subr.mxu0 0.0
    %821 = vmatpush1.xpose.msra.mxu0 0.0
    %822 = vmatprep.subr.mxu0 0.0
    %823 = vmatpush1.xpose.msra.mxu0 0.0
    %824 = vmatprep.subr.mxu0 0.0
    %825 = vmatpush1.xpose.msra.mxu0 0.0
    %826 = vmatprep.subr.mxu0 0.0
    %827 = vmatpush1.xpose.msra.mxu0 0.0
    %828 = vmatprep.subr.mxu0 0.0
    %829 = vmatpush1.xpose.msra.mxu0 0.0
    %830 = vmatprep.subr.mxu0 0.0
    %831 = vmatpush1.xpose.msra.mxu0 0.0
    %832 = vmatprep.subr.mxu0 0.0
    %833 = vmatpush1.xpose.msra.mxu0 0.0
    %834 = vmatprep.subr.mxu0 0.0
    %835 = vmatpush1.xpose.msra.mxu0 0.0
    %836 = vmatprep.subr.mxu0 0.0
    %837 = vmatpush1.xpose.msra.mxu0 0.0
    %838 = vmatprep.subr.mxu0 0.0
    %839 = vmatpush1.xpose.msra.mxu0 0.0
    %840 = vmatprep.subr.mxu0 0.0
    %841 = vmatpush1.xpose.msra.mxu0 0.0
    %842 = vmatprep.subr.mxu0 0.0
    %843 = vmatpush1.xpose.msra.mxu0 0.0
    %844 = vmatprep.subr.mxu0 0.0
    %845 = vmatpush1.xpose.msra.mxu0 0.0
    %846 = vmatprep.subr.mxu0 0.0
    %847 = vmatpush1.xpose.msra.mxu0 0.0
    %848 = vmatprep.subr.mxu0 0.0
    %849 = vmatpush1.xpose.msra.mxu0 0.0
    %850 = vmatprep.subr.mxu0 0.0
    %851 = vmatpush1.xpose.msra.mxu0 0.0
    %852 = vmatprep.subr.mxu0 0.0
    %853 = vmatpush1.xpose.msra.mxu0 0.0
    %854 = vmatprep.subr.mxu0 0.0
    %855 = vmatpush1.xpose.msra.mxu0 0.0
    %856 = vmatprep.mubr.f32.mxu0 0.0
    %857 = vmatmul.mubr.f32.gmra.mrb[0].mxu0 %v784
    %v858 = vpop.f32.mrb[0].mxu0
    %v859 = vadd.f32 0.0, %v858
    %v860 = vpop.f32.mrb[0].mxu0
    %861 = vmatprep.mubr.f32.mxu0 0.0
    %862 = vmatmul.mubr.f32.gmra.mrb[0].mxu0 %v786
    %v863 = vpop.f32.mrb[0].mxu0
    %v864 = vadd.f32 0.0, %v863
    %v865 = vpop.f32.mrb[0].mxu0
    %866 = vdwg.mxu0
    %v867 = vmul.f32 %v859, 0.35355338
    %v868 = vmul.f32 %v864, 0.35355338
    %v869 = vadd.f32 %v867, %v202
    %v870 = vadd.f32 %v868, %v203
    %v871 = vsel %vm298, %v869, -inf
    %872 = vmax.xlane.f32.xlu0 %v871
    %v873 = vpop.xlane.xlu0 %872
    %v874 = vsel %vm298, %v870, -inf
    %875 = vmax.xlane.f32.xlu0 %v874
    %v876 = vpop.xlane.xlu0 %875
    %v877 = vsub.f32 %v869, %v873
    %v878 = vsub.f32 %v870, %v876
    %v879 = vmul.f32 %v877, 1.442695
    %v880 = vpow.pop %v879
    %v881 = vmul.f32 %v878, 1.442695
    %v882 = vpow.pop %v881
    %v883 = vsel %vm298, %v880, 0.0
    %884 = vadd.xlane.f32.xlu0 %v883
    %v885 = vpop.xlane.xlu0 %884
    %v886 = vsel %vm298, %v882, 0.0
    %887 = vadd.xlane.f32.xlu0 %v886
    %v888 = vpop.xlane.xlu0 %887
    %v889 = vrcp.pop %v885
    %v890 = vmul.f32 %v880, %v889
    %v891 = vrcp.pop %v888
    %v892 = vmul.f32 %v882, %v891
    %893 = vrot.lane.b32.xlu0 %v194, 48
    %v894 = vpop.permute.xlu0 %893
    %895 = vrot.lane.b32.xlu0 %v199, 48
    %v896 = vpop.permute.xlu0 %895
    %v900 = vsel %vm298, %v890, 0
    %v903 = vsel %vm298, %v892, 0
    %905 = vmatprep.subr.mxu0 0.0
    %906 = vmatpush1.msra.mxu0 %v894
    %907 = vmatprep.subr.mxu0 0.0
    %908 = vmatpush1.msra.mxu0 %v896
    %909 = vmatprep.subr.mxu0 0.0
    %910 = vmatpush1.msra.mxu0 0.0
    %911 = vmatprep.subr.mxu0 0.0
    %912 = vmatpush1.msra.mxu0 0.0
    %913 = vmatprep.subr.mxu0 0.0
    %914 = vmatpush1.msra.mxu0 0.0
    %915 = vmatprep.subr.mxu0 0.0
    %916 = vmatpush1.msra.mxu0 0.0
    %917 = vmatprep.subr.mxu0 0.0
    %918 = vmatpush1.msra.mxu0 0.0
    %919 = vmatprep.subr.mxu0 0.0
    %920 = vmatpush1.msra.mxu0 0.0
    %921 = vmatprep.subr.mxu0 0.0
    %922 = vmatpush1.msra.mxu0 0.0
    %923 = vmatprep.subr.mxu0 0.0
    %924 = vmatpush1.msra.mxu0 0.0
    %925 = vmatprep.subr.mxu0 0.0
    %926 = vmatpush1.msra.mxu0 0.0
    %927 = vmatprep.subr.mxu0 0.0
    %928 = vmatpush1.msra.mxu0 0.0
    %929 = vmatprep.subr.mxu0 0.0
    %930 = vmatpush1.msra.mxu0 0.0
    %931 = vmatprep.subr.mxu0 0.0
    %932 = vmatpush1.msra.mxu0 0.0
    %933 = vmatprep.subr.mxu0 0.0
    %934 = vmatpush1.msra.mxu0 0.0
    %935 = vmatprep.subr.mxu0 0.0
    %936 = vmatpush1.msra.mxu0 0.0
    %937 = vmatprep.subr.mxu0 0.0
    %938 = vmatpush1.msra.mxu0 0.0
    %939 = vmatprep.subr.mxu0 0.0
    %940 = vmatpush1.msra.mxu0 0.0
    %941 = vmatprep.subr.mxu0 0.0
    %942 = vmatpush1.msra.mxu0 0.0
    %943 = vmatprep.subr.mxu0 0.0
    %944 = vmatpush1.msra.mxu0 0.0
    %945 = vmatprep.subr.mxu0 0.0
    %946 = vmatpush1.msra.mxu0 0.0
    %947 = vmatprep.subr.mxu0 0.0
    %948 = vmatpush1.msra.mxu0 0.0
    %949 = vmatprep.subr.mxu0 0.0
    %950 = vmatpush1.msra.mxu0 0.0
    %951 = vmatprep.subr.mxu0 0.0
    %952 = vmatpush1.msra.mxu0 0.0
    %953 = vmatprep.subr.mxu0 0.0
    %954 = vmatpush1.msra.mxu0 0.0
    %955 = vmatprep.subr.mxu0 0.0
    %956 = vmatpush1.msra.mxu0 0.0
    %957 = vmatprep.subr.mxu0 0.0
    %958 = vmatpush1.msra.mxu0 0.0
    %959 = vmatprep.subr.mxu0 0.0
    %960 = vmatpush1.msra.mxu0 0.0
    %961 = vmatprep.subr.mxu0 0.0
    %962 = vmatpush1.msra.mxu0 0.0
    %963 = vmatprep.subr.mxu0 0.0
    %964 = vmatpush1.msra.mxu0 0.0
    %965 = vmatprep.subr.mxu0 0.0
    %966 = vmatpush1.msra.mxu0 0.0
    %967 = vmatprep.subr.mxu0 0.0
    %968 = vmatpush1.msra.mxu0 0.0
    %969 = vmatprep.mubr.f32.mxu0 0.0
    %970 = vmatmul.mubr.f32.gmra.mrb[0].mxu0 %v900
    %v971 = vpop.f32.mrb[0].mxu0
    %v972 = vadd.f32 0.0, %v971
    %v973 = vpop.f32.mrb[0].mxu0
    %974 = vmatprep.mubr.f32.mxu0 0.0
    %975 = vmatmul.mubr.f32.gmra.mrb[0].mxu0 %v903
    %v976 = vpop.f32.mrb[0].mxu0
    %v977 = vadd.f32 0.0, %v976
    %v978 = vpop.f32.mrb[0].mxu0
    %979 = vdwg.mxu0
    %v980 = vld [vmem:[%s6 + $0x10] sm:$0xff]
    %v982 = vsel %vm210, %v972, 0
    %v985 = vsel %vm210, %v977, 0
    %987 = vmatprep.subr.mxu0 0.0
    %988 = vmatpush1.msra.mxu0 %v980
    %989 = vmatprep.subr.mxu0 0.0
    %990 = vmatpush1.msra.mxu0 0.0
    %991 = vmatprep.subr.mxu0 0.0
    %992 = vmatpush1.msra.mxu0 0.0
    %993 = vmatprep.subr.mxu0 0.0
    %994 = vmatpush1.msra.mxu0 0.0
    %995 = vmatprep.subr.mxu0 0.0
    %996 = vmatpush1.msra.mxu0 0.0
    %997 = vmatprep.subr.mxu0 0.0
    %998 = vmatpush1.msra.mxu0 0.0
    %999 = vmatprep.subr.mxu0 0.0
    %1000 = vmatpush1.msra.mxu0 0.0
    %1001 = vmatprep.subr.mxu0 0.0
    %1002 = vmatpush1.msra.mxu0 0.0
    %1003 = vmatprep.subr.mxu0 0.0
    %1004 = vmatpush1.msra.mxu0 0.0
    %1005 = vmatprep.subr.mxu0 0.0
    %1006 = vmatpush1.msra.mxu0 0.0
    %1007 = vmatprep.subr.mxu0 0.0
    %1008 = vmatpush1.msra.mxu0 0.0
    %1009 = vmatprep.subr.mxu0 0.0
    %1010 = vmatpush1.msra.mxu0 0.0
    %1011 = vmatprep.subr.mxu0 0.0
    %1012 = vmatpush1.msra.mxu0 0.0
    %1013 = vmatprep.subr.mxu0 0.0
    %1014 = vmatpush1.msra.mxu0 0.0
    %1015 = vmatprep.subr.mxu0 0.0
    %1016 = vmatpush1.msra.mxu0 0.0
    %1017 = vmatprep.subr.mxu0 0.0
    %1018 = vmatpush1.msra.mxu0 0.0
    %1019 = vmatprep.subr.mxu0 0.0
    %1020 = vmatpush1.msra.mxu0 0.0
    %1021 = vmatprep.subr.mxu0 0.0
    %1022 = vmatpush1.msra.mxu0 0.0
    %1023 = vmatprep.subr.mxu0 0.0
    %1024 = vmatpush1.msra.mxu0 0.0
    %1025 = vmatprep.subr.mxu0 0.0
    %1026 = vmatpush1.msra.mxu0 0.0
    %1027 = vmatprep.subr.mxu0 0.0
    %1028 = vmatpush1.msra.mxu0 0.0
    %1029 = vmatprep.subr.mxu0 0.0
    %1030 = vmatpush1.msra.mxu0 0.0
    %1031 = vmatprep.subr.mxu0 0.0
    %1032 = vmatpush1.msra.mxu0 0.0
    %1033 = vmatprep.subr.mxu0 0.0
    %1034 = vmatpush1.msra.mxu0 0.0
    %1035 = vmatprep.subr.mxu0 0.0
    %1036 = vmatpush1.msra.mxu0 0.0
    %1037 = vmatprep.subr.mxu0 0.0
    %1038 = vmatpush1.msra.mxu0 0.0
    %1039 = vmatprep.subr.mxu0 0.0
    %1040 = vmatpush1.msra.mxu0 0.0
    %1041 = vmatprep.subr.mxu0 0.0
    %1042 = vmatpush1.msra.mxu0 0.0
    %1043 = vmatprep.subr.mxu0 0.0
    %1044 = vmatpush1.msra.mxu0 0.0
    %1045 = vmatprep.subr.mxu0 0.0
    %1046 = vmatpush1.msra.mxu0 0.0
    %1047 = vmatprep.subr.mxu0 0.0
    %1048 = vmatpush1.msra.mxu0 0.0
    %1049 = vmatprep.subr.mxu0 0.0
    %1050 = vmatpush1.msra.mxu0 0.0
    %1051 = vmatprep.mubr.f32.mxu0 0.0
    %1052 = vmatmul.mubr.f32.gmra.mrb[0].mxu0 %v982
    %v1053 = vpop.f32.mrb[0].mxu0
    %v1054 = vadd.f32 0.0, %v1053
    %v1055 = vpop.f32.mrb[0].mxu0
    %1056 = vmatprep.mubr.f32.mxu0 0.0
    %1057 = vmatmul.mubr.f32.gmra.mrb[0].mxu0 %v985
    %v1058 = vpop.f32.mrb[0].mxu0
    %v1059 = vadd.f32 0.0, %v1058
    %v1060 = vpop.f32.mrb[0].mxu0
    %1061 = vdwg.mxu0
    %v1062 = vadd.f32 %v768, %v1054
    %v1063 = vadd.f32 %v773, %v1059
    %1064 = vrot.lane.b32.xlu0 %v194, 104
    %v1065 = vpop.permute.xlu0 %1064
    %1066 = vrot.lane.b32.xlu0 %v199, 104
    %v1067 = vpop.permute.xlu0 %1066
    %1068 = vrot.lane.b32.xlu0 %v194, 72
    %v1069 = vpop.permute.xlu0 %1068
    %1070 = vrot.lane.b32.xlu0 %v199, 72
    %v1071 = vpop.permute.xlu0 %1070
    %v1072 = vsel %vm210, %v1065, 0
    %v1074 = vsel %vm210, %v1067, 0
    %v1076 = vsel %vm210, %v1069, 0
    %v1078 = vsel %vm210, %v1071, 0
    %1080 = vmatprep.subr.mxu0 0.0
    %1081 = vmatpush1.xpose.msra.mxu0 %v1076
    %1082 = vmatprep.subr.mxu0 0.0
    %1083 = vmatpush1.xpose.msra.mxu0 %v1078
    %1084 = vmatprep.subr.mxu0 0.0
    %1085 = vmatpush1.xpose.msra.mxu0 0.0
    %1086 = vmatprep.subr.mxu0 0.0
    %1087 = vmatpush1.xpose.msra.mxu0 0.0
    %1088 = vmatprep.subr.mxu0 0.0
    %1089 = vmatpush1.xpose.msra.mxu0 0.0
    %1090 = vmatprep.subr.mxu0 0.0
    %1091 = vmatpush1.xpose.msra.mxu0 0.0
    %1092 = vmatprep.subr.mxu0 0.0
    %1093 = vmatpush1.xpose.msra.mxu0 0.0
    %1094 = vmatprep.subr.mxu0 0.0
    %1095 = vmatpush1.xpose.msra.mxu0 0.0
    %1096 = vmatprep.subr.mxu0 0.0
    %1097 = vmatpush1.xpose.msra.mxu0 0.0
    %1098 = vmatprep.subr.mxu0 0.0
    %1099 = vmatpush1.xpose.msra.mxu0 0.0
    %1100 = vmatprep.subr.mxu0 0.0
    %1101 = vmatpush1.xpose.msra.mxu0 0.0
    %1102 = vmatprep.subr.mxu0 0.0
    %1103 = vmatpush1.xpose.msra.mxu0 0.0
    %1104 = vmatprep.subr.mxu0 0.0
    %1105 = vmatpush1.xpose.msra.mxu0 0.0
    %1106 = vmatprep.subr.mxu0 0.0
    %1107 = vmatpush1.xpose.msra.mxu0 0.0
    %1108 = vmatprep.subr.mxu0 0.0
    %1109 = vmatpush1.xpose.msra.mxu0 0.0
    %1110 = vmatprep.subr.mxu0 0.0
    %1111 = vmatpush1.xpose.msra.mxu0 0.0
    %1112 = vmatprep.subr.mxu0 0.0
    %1113 = vmatpush1.xpose.msra.mxu0 0.0
    %1114 = vmatprep.subr.mxu0 0.0
    %1115 = vmatpush1.xpose.msra.mxu0 0.0
    %1116 = vmatprep.subr.mxu0 0.0
    %1117 = vmatpush1.xpose.msra.mxu0 0.0
    %1118 = vmatprep.subr.mxu0 0.0
    %1119 = vmatpush1.xpose.msra.mxu0 0.0
    %1120 = vmatprep.subr.mxu0 0.0
    %1121 = vmatpush1.xpose.msra.mxu0 0.0
    %1122 = vmatprep.subr.mxu0 0.0
    %1123 = vmatpush1.xpose.msra.mxu0 0.0
    %1124 = vmatprep.subr.mxu0 0.0
    %1125 = vmatpush1.xpose.msra.mxu0 0.0
    %1126 = vmatprep.subr.mxu0 0.0
    %1127 = vmatpush1.xpose.msra.mxu0 0.0
    %1128 = vmatprep.subr.mxu0 0.0
    %1129 = vmatpush1.xpose.msra.mxu0 0.0
    %1130 = vmatprep.subr.mxu0 0.0
    %1131 = vmatpush1.xpose.msra.mxu0 0.0
    %1132 = vmatprep.subr.mxu0 0.0
    %1133 = vmatpush1.xpose.msra.mxu0 0.0
    %1134 = vmatprep.subr.mxu0 0.0
    %1135 = vmatpush1.xpose.msra.mxu0 0.0
    %1136 = vmatprep.subr.mxu0 0.0
    %1137 = vmatpush1.xpose.msra.mxu0 0.0
    %1138 = vmatprep.subr.mxu0 0.0
    %1139 = vmatpush1.xpose.msra.mxu0 0.0
    %1140 = vmatprep.subr.mxu0 0.0
    %1141 = vmatpush1.xpose.msra.mxu0 0.0
    %1142 = vmatprep.subr.mxu0 0.0
    %1143 = vmatpush1.xpose.msra.mxu0 0.0
    %1144 = vmatprep.mubr.f32.mxu0 0.0
    %1145 = vmatmul.mubr.f32.gmra.mrb[0].mxu0 %v1072
    %v1146 = vpop.f32.mrb[0].mxu0
    %v1147 = vadd.f32 0.0, %v1146
    %v1148 = vpop.f32.mrb[0].mxu0
    %1149 = vmatprep.mubr.f32.mxu0 0.0
    %1150 = vmatmul.mubr.f32.gmra.mrb[0].mxu0 %v1074
    %v1151 = vpop.f32.mrb[0].mxu0
    %v1152 = vadd.f32 0.0, %v1151
    %v1153 = vpop.f32.mrb[0].mxu0
    %1154 = vdwg.mxu0
    %v1155 = vmul.f32 %v1147, 0.35355338
    %v1156 = vmul.f32 %v1152, 0.35355338
    %v1157 = vadd.f32 %v1155, %v202
    %v1158 = vadd.f32 %v1156, %v203
    %v1159 = vsel %vm298, %v1157, -inf
    %1160 = vmax.xlane.f32.xlu0 %v1159
    %v1161 = vpop.xlane.xlu0 %1160
    %v1162 = vsel %vm298, %v1158, -inf
    %1163 = vmax.xlane.f32.xlu0 %v1162
    %v1164 = vpop.xlane.xlu0 %1163
    %v1165 = vsub.f32 %v1157, %v1161
    %v1166 = vsub.f32 %v1158, %v1164
    %v1167 = vmul.f32 %v1165, 1.442695
    %v1168 = vpow.pop %v1167
    %v1169 = vmul.f32 %v1166, 1.442695
    %v1170 = vpow.pop %v1169
    %v1171 = vsel %vm298, %v1168, 0.0
    %1172 = vadd.xlane.f32.xlu0 %v1171
    %v1173 = vpop.xlane.xlu0 %1172
    %v1174 = vsel %vm298, %v1170, 0.0
    %1175 = vadd.xlane.f32.xlu0 %v1174
    %v1176 = vpop.xlane.xlu0 %1175
    %v1177 = vrcp.pop %v1173
    %v1178 = vmul.f32 %v1168, %v1177
    %v1179 = vrcp.pop %v1176
    %v1180 = vmul.f32 %v1170, %v1179
    %1181 = vrot.lane.b32.xlu0 %v194, 40
    %v1182 = vpop.permute.xlu0 %1181
    %1183 = vrot.lane.b32.xlu0 %v199, 40
    %v1184 = vpop.permute.xlu0 %1183
    %v1188 = vsel %vm298, %v1178, 0
    %v1191 = vsel %vm298, %v1180, 0
    %1193 = vmatprep.subr.mxu0 0.0
    %1194 = vmatpush1.msra.mxu0 %v1182
    %1195 = vmatprep.subr.mxu0 0.0
    %1196 = vmatpush1.msra.mxu0 %v1184
    %1197 = vmatprep.subr.mxu0 0.0
    %1198 = vmatpush1.msra.mxu0 0.0
    %1199 = vmatprep.subr.mxu0 0.0
    %1200 = vmatpush1.msra.mxu0 0.0
    %1201 = vmatprep.subr.mxu0 0.0
    %1202 = vmatpush1.msra.mxu0 0.0
    %1203 = vmatprep.subr.mxu0 0.0
    %1204 = vmatpush1.msra.mxu0 0.0
    %1205 = vmatprep.subr.mxu0 0.0
    %1206 = vmatpush1.msra.mxu0 0.0
    %1207 = vmatprep.subr.mxu0 0.0
    %1208 = vmatpush1.msra.mxu0 0.0
    %1209 = vmatprep.subr.mxu0 0.0
    %1210 = vmatpush1.msra.mxu0 0.0
    %1211 = vmatprep.subr.mxu0 0.0
    %1212 = vmatpush1.msra.mxu0 0.0
    %1213 = vmatprep.subr.mxu0 0.0
    %1214 = vmatpush1.msra.mxu0 0.0
    %1215 = vmatprep.subr.mxu0 0.0
    %1216 = vmatpush1.msra.mxu0 0.0
    %1217 = vmatprep.subr.mxu0 0.0
    %1218 = vmatpush1.msra.mxu0 0.0
    %1219 = vmatprep.subr.mxu0 0.0
    %1220 = vmatpush1.msra.mxu0 0.0
    %1221 = vmatprep.subr.mxu0 0.0
    %1222 = vmatpush1.msra.mxu0 0.0
    %1223 = vmatprep.subr.mxu0 0.0
    %1224 = vmatpush1.msra.mxu0 0.0
    %1225 = vmatprep.subr.mxu0 0.0
    %1226 = vmatpush1.msra.mxu0 0.0
    %1227 = vmatprep.subr.mxu0 0.0
    %1228 = vmatpush1.msra.mxu0 0.0
    %1229 = vmatprep.subr.mxu0 0.0
    %1230 = vmatpush1.msra.mxu0 0.0
    %1231 = vmatprep.subr.mxu0 0.0
    %1232 = vmatpush1.msra.mxu0 0.0
    %1233 = vmatprep.subr.mxu0 0.0
    %1234 = vmatpush1.msra.mxu0 0.0
    %1235 = vmatprep.subr.mxu0 0.0
    %1236 = vmatpush1.msra.mxu0 0.0
    %1237 = vmatprep.subr.mxu0 0.0
    %1238 = vmatpush1.msra.mxu0 0.0
    %1239 = vmatprep.subr.mxu0 0.0
    %1240 = vmatpush1.msra.mxu0 0.0
    %1241 = vmatprep.subr.mxu0 0.0
    %1242 = vmatpush1.msra.mxu0 0.0
    %1243 = vmatprep.subr.mxu0 0.0
    %1244 = vmatpush1.msra.mxu0 0.0
    %1245 = vmatprep.subr.mxu0 0.0
    %1246 = vmatpush1.msra.mxu0 0.0
    %1247 = vmatprep.subr.mxu0 0.0
    %1248 = vmatpush1.msra.mxu0 0.0
    %1249 = vmatprep.subr.mxu0 0.0
    %1250 = vmatpush1.msra.mxu0 0.0
    %1251 = vmatprep.subr.mxu0 0.0
    %1252 = vmatpush1.msra.mxu0 0.0
    %1253 = vmatprep.subr.mxu0 0.0
    %1254 = vmatpush1.msra.mxu0 0.0
    %1255 = vmatprep.subr.mxu0 0.0
    %1256 = vmatpush1.msra.mxu0 0.0
    %1257 = vmatprep.mubr.f32.mxu0 0.0
    %1258 = vmatmul.mubr.f32.gmra.mrb[0].mxu0 %v1188
    %v1259 = vpop.f32.mrb[0].mxu0
    %v1260 = vadd.f32 0.0, %v1259
    %v1261 = vpop.f32.mrb[0].mxu0
    %1262 = vmatprep.mubr.f32.mxu0 0.0
    %1263 = vmatmul.mubr.f32.gmra.mrb[0].mxu0 %v1191
    %v1264 = vpop.f32.mrb[0].mxu0
    %v1265 = vadd.f32 0.0, %v1264
    %v1266 = vpop.f32.mrb[0].mxu0
    %1267 = vdwg.mxu0
    %v1268 = vld [vmem:[%s6 + $0x18] sm:$0xff]
    %v1270 = vsel %vm210, %v1260, 0
    %v1273 = vsel %vm210, %v1265, 0
    %1275 = vmatprep.subr.mxu0 0.0
    %1276 = vmatpush1.msra.mxu0 %v1268
    %1277 = vmatprep.subr.mxu0 0.0
    %1278 = vmatpush1.msra.mxu0 0.0
    %1279 = vmatprep.subr.mxu0 0.0
    %1280 = vmatpush1.msra.mxu0 0.0
    %1281 = vmatprep.subr.mxu0 0.0
    %1282 = vmatpush1.msra.mxu0 0.0
    %1283 = vmatprep.subr.mxu0 0.0
    %1284 = vmatpush1.msra.mxu0 0.0
    %1285 = vmatprep.subr.mxu0 0.0
    %1286 = vmatpush1.msra.mxu0 0.0
    %1287 = vmatprep.subr.mxu0 0.0
    %1288 = vmatpush1.msra.mxu0 0.0
    %1289 = vmatprep.subr.mxu0 0.0
    %1290 = vmatpush1.msra.mxu0 0.0
    %1291 = vmatprep.subr.mxu0 0.0
    %1292 = vmatpush1.msra.mxu0 0.0
    %1293 = vmatprep.subr.mxu0 0.0
    %1294 = vmatpush1.msra.mxu0 0.0
    %1295 = vmatprep.subr.mxu0 0.0
    %1296 = vmatpush1.msra.mxu0 0.0
    %1297 = vmatprep.subr.mxu0 0.0
    %1298 = vmatpush1.msra.mxu0 0.0
    %1299 = vmatprep.subr.mxu0 0.0
    %1300 = vmatpush1.msra.mxu0 0.0
    %1301 = vmatprep.subr.mxu0 0.0
    %1302 = vmatpush1.msra.mxu0 0.0
    %1303 = vmatprep.subr.mxu0 0.0
    %1304 = vmatpush1.msra.mxu0 0.0
    %1305 = vmatprep.subr.mxu0 0.0
    %1306 = vmatpush1.msra.mxu0 0.0
    %1307 = vmatprep.subr.mxu0 0.0
    %1308 = vmatpush1.msra.mxu0 0.0
    %1309 = vmatprep.subr.mxu0 0.0
    %1310 = vmatpush1.msra.mxu0 0.0
    %1311 = vmatprep.subr.mxu0 0.0
    %1312 = vmatpush1.msra.mxu0 0.0
    %1313 = vmatprep.subr.mxu0 0.0
    %1314 = vmatpush1.msra.mxu0 0.0
    %1315 = vmatprep.subr.mxu0 0.0
    %1316 = vmatpush1.msra.mxu0 0.0
    %1317 = vmatprep.subr.mxu0 0.0
    %1318 = vmatpush1.msra.mxu0 0.0
    %1319 = vmatprep.subr.mxu0 0.0
    %1320 = vmatpush1.msra.mxu0 0.0
    %1321 = vmatprep.subr.mxu0 0.0
    %1322 = vmatpush1.msra.mxu0 0.0
    %1323 = vmatprep.subr.mxu0 0.0
    %1324 = vmatpush1.msra.mxu0 0.0
    %1325 = vmatprep.subr.mxu0 0.0
    %1326 = vmatpush1.msra.mxu0 0.0
    %1327 = vmatprep.subr.mxu0 0.0
    %1328 = vmatpush1.msra.mxu0 0.0
    %1329 = vmatprep.subr.mxu0 0.0
    %1330 = vmatpush1.msra.mxu0 0.0
    %1331 = vmatprep.subr.mxu0 0.0
    %1332 = vmatpush1.msra.mxu0 0.0
    %1333 = vmatprep.subr.mxu0 0.0
    %1334 = vmatpush1.msra.mxu0 0.0
    %1335 = vmatprep.subr.mxu0 0.0
    %1336 = vmatpush1.msra.mxu0 0.0
    %1337 = vmatprep.subr.mxu0 0.0
    %1338 = vmatpush1.msra.mxu0 0.0
    %1339 = vmatprep.mubr.f32.mxu0 0.0
    %1340 = vmatmul.mubr.f32.gmra.mrb[0].mxu0 %v1270
    %v1341 = vpop.f32.mrb[0].mxu0
    %v1342 = vadd.f32 0.0, %v1341
    %v1343 = vpop.f32.mrb[0].mxu0
    %1344 = vmatprep.mubr.f32.mxu0 0.0
    %1345 = vmatmul.mubr.f32.gmra.mrb[0].mxu0 %v1273
    %v1346 = vpop.f32.mrb[0].mxu0
    %v1347 = vadd.f32 0.0, %v1346
    %v1348 = vpop.f32.mrb[0].mxu0
    %1349 = vdwg.mxu0
    %v1350 = vadd.f32 %v1062, %v1342
    %v1351 = vadd.f32 %v1063, %v1347
    %v1352 = vadd.f32 %v48, %v1350
    %v1353 = vadd.f32 %v49, %v1351
    %v1354 = vld [vmem:[%s7] sm:$0x1]
    %v1356 = vlaneseq
    %v1357 = vshrl.u32 %v1356, 7
    %v1358 = vsub.s32 0, %v1357
    %v1359 = vrot.slane %v1354, %v1358
    %v1361 = vadd.f32 %v1352, %v1359
    %v1362 = vadd.f32 %v1353, %v1359
    %v1363 = vld [vmem:[%s8] sm:$0x1]
    %v1364 = vld [vmem:[%s9] sm:$0x1]
    %v1365 = vsel %vm52, %v1361, 0.0
    %1366 = vadd.xlane.f32.xlu0 %v1365
    %v1367 = vpop.xlane.xlu0 %1366
    %v1368 = vsel %vm52, %v1362, 0.0
    %1369 = vadd.xlane.f32.xlu0 %v1368
    %v1370 = vpop.xlane.xlu0 %1369
    %v1371 = vmul.f32 %v1367, %v59
    %v1372 = vmul.f32 %v1370, %v59
    %v1373 = vsub.f32 %v1361, %v1371
    %v1374 = vsub.f32 %v1362, %v1372
    %v1375 = vmul.f32 %v1373, %v1373
    %v1376 = vmul.f32 %v1374, %v1374
    %v1377 = vsel %vm52, %v1375, 0.0
    %1378 = vadd.xlane.f32.xlu0 %v1377
    %v1379 = vpop.xlane.xlu0 %1378
    %v1380 = vsel %vm52, %v1376, 0.0
    %1381 = vadd.xlane.f32.xlu0 %v1380
    %v1382 = vpop.xlane.xlu0 %1381
    %v1383 = vmul.f32 %v1379, 0.032258064
    %v1384 = vmul.f32 %v1382, 0.032258064
    %v1386 = vlaneseq
    %v1387 = vshrl.u32 %v1386, 7
    %v1388 = vsub.s32 0, %v1387
    %v1389 = vrot.slane %v1363, %v1388
    %v1391 = vmul.f32 %v1389, %v1373
    %v1392 = vmul.f32 %v1389, %v1374
    %v1393 = vrsqrt.pop %v1383
    %v1394 = vmul.f32 %v1383, %v1393
    %vm1395 = vcmp.eq.f32.partialorder %v1383, inf
    %v1396 = vsel %vm1395, %v1383, %v1394
    %vm1397 = vcmp.eq.f32.partialorder %v1383, 0.0
    %v1398 = vand.u32 %v1383, 2147483648
    %v1399 = vsel %vm1397, %v1398, %v1396
    %v1400 = vrsqrt.pop %v1384
    %v1401 = vmul.f32 %v1384, %v1400
    %vm1402 = vcmp.eq.f32.partialorder %v1384, inf
    %v1403 = vsel %vm1402, %v1384, %v1401
    %vm1404 = vcmp.eq.f32.partialorder %v1384, 0.0
    %v1405 = vand.u32 %v1384, 2147483648
    %v1406 = vsel %vm1404, %v1405, %v1403
    %v1407 = vadd.f32 %v1399, 1e-06
    %v1408 = vadd.f32 %v1406, 1e-06
    %v1409 = vrcp.pop %v1407
    %v1410 = vmul.f32 %v1391, %v1409
    %v1411 = vrcp.pop %v1408
    %v1412 = vmul.f32 %v1392, %v1411
    %v1414 = vlaneseq
    %v1415 = vshrl.u32 %v1414, 7
    %v1416 = vsub.s32 0, %v1415
    %v1417 = vrot.slane %v1364, %v1416
    %v1419 = vadd.f32 %v1410, %v1417
    %v1420 = vadd.f32 %v1412, %v1417
    %v1421 = vld [vmem:[%s10] sm:$0xff]
    %v1422 = vld [vmem:[%s10 + $0x8] sm:$0xff]
    %v1423 = vld [vmem:[%s10 + $0x10] sm:$0xff]
    %v1424 = vld [vmem:[%s10 + $0x18] sm:$0xff]
    %v1425 = vld [vmem:[%s11] sm:$0x1]
    %v1427 = vlaneseq
    %v1428 = vshrl.u32 %v1427, 7
    %v1429 = vsub.s32 0, %v1428
    %v1430 = vrot.slane %v1425, %v1429
    %v1433 = vsel %vm52, %v1419, 0
    %v1436 = vsel %vm52, %v1420, 0
    %1438 = vmatprep.subr.mxu0 0.0
    %1439 = vmatpush1.msra.mxu0 %v1421
    %1440 = vmatprep.subr.mxu0 0.0
    %1441 = vmatpush1.msra.mxu0 %v1422
    %1442 = vmatprep.subr.mxu0 0.0
    %1443 = vmatpush1.msra.mxu0 %v1423
    %1444 = vmatprep.subr.mxu0 0.0
    %1445 = vmatpush1.msra.mxu0 %v1424
    %1446 = vmatprep.subr.mxu0 0.0
    %1447 = vmatpush1.msra.mxu0 0.0
    %1448 = vmatprep.subr.mxu0 0.0
    %1449 = vmatpush1.msra.mxu0 0.0
    %1450 = vmatprep.subr.mxu0 0.0
    %1451 = vmatpush1.msra.mxu0 0.0
    %1452 = vmatprep.subr.mxu0 0.0
    %1453 = vmatpush1.msra.mxu0 0.0
    %1454 = vmatprep.subr.mxu0 0.0
    %1455 = vmatpush1.msra.mxu0 0.0
    %1456 = vmatprep.subr.mxu0 0.0
    %1457 = vmatpush1.msra.mxu0 0.0
    %1458 = vmatprep.subr.mxu0 0.0
    %1459 = vmatpush1.msra.mxu0 0.0
    %1460 = vmatprep.subr.mxu0 0.0
    %1461 = vmatpush1.msra.mxu0 0.0
    %1462 = vmatprep.subr.mxu0 0.0
    %1463 = vmatpush1.msra.mxu0 0.0
    %1464 = vmatprep.subr.mxu0 0.0
    %1465 = vmatpush1.msra.mxu0 0.0
    %1466 = vmatprep.subr.mxu0 0.0
    %1467 = vmatpush1.msra.mxu0 0.0
    %1468 = vmatprep.subr.mxu0 0.0
    %1469 = vmatpush1.msra.mxu0 0.0
    %1470 = vmatprep.subr.mxu0 0.0
    %1471 = vmatpush1.msra.mxu0 0.0
    %1472 = vmatprep.subr.mxu0 0.0
    %1473 = vmatpush1.msra.mxu0 0.0
    %1474 = vmatprep.subr.mxu0 0.0
    %1475 = vmatpush1.msra.mxu0 0.0
    %1476 = vmatprep.subr.mxu0 0.0
    %1477 = vmatpush1.msra.mxu0 0.0
    %1478 = vmatprep.subr.mxu0 0.0
    %1479 = vmatpush1.msra.mxu0 0.0
    %1480 = vmatprep.subr.mxu0 0.0
    %1481 = vmatpush1.msra.mxu0 0.0
    %1482 = vmatprep.subr.mxu0 0.0
    %1483 = vmatpush1.msra.mxu0 0.0
    %1484 = vmatprep.subr.mxu0 0.0
    %1485 = vmatpush1.msra.mxu0 0.0
    %1486 = vmatprep.subr.mxu0 0.0
    %1487 = vmatpush1.msra.mxu0 0.0
    %1488 = vmatprep.subr.mxu0 0.0
    %1489 = vmatpush1.msra.mxu0 0.0
    %1490 = vmatprep.subr.mxu0 0.0
    %1491 = vmatpush1.msra.mxu0 0.0
    %1492 = vmatprep.subr.mxu0 0.0
    %1493 = vmatpush1.msra.mxu0 0.0
    %1494 = vmatprep.subr.mxu0 0.0
    %1495 = vmatpush1.msra.mxu0 0.0
    %1496 = vmatprep.subr.mxu0 0.0
    %1497 = vmatpush1.msra.mxu0 0.0
    %1498 = vmatprep.subr.mxu0 0.0
    %1499 = vmatpush1.msra.mxu0 0.0
    %1500 = vmatprep.subr.mxu0 0.0
    %1501 = vmatpush1.msra.mxu0 0.0
    %1502 = vmatprep.mubr.f32.mxu0 0.0
    %1503 = vmatmul.mubr.f32.gmra.mrb[0].mxu0 %v1433
    %v1504 = vpop.f32.mrb[0].mxu0
    %v1505 = vadd.f32 %v1430, %v1504
    %v1506 = vpop.f32.mrb[0].mxu0
    %1507 = vmatprep.mubr.f32.mxu0 0.0
    %1508 = vmatmul.mubr.f32.gmra.mrb[0].mxu0 %v1436
    %v1509 = vpop.f32.mrb[0].mxu0
    %v1510 = vadd.f32 %v1430, %v1509
    %v1511 = vpop.f32.mrb[0].mxu0
    %1512 = vdwg.mxu0
    %v1513 = vmax.f32 %v1505, 0.0
    %v1514 = vmax.f32 %v1510, 0.0
    %v1515 = vld [vmem:[%s12] sm:$0xff]
    %v1516 = vld [vmem:[%s12 + $0x8] sm:$0xff]
    %v1517 = vld [vmem:[%s12 + $0x10] sm:$0xff]
    %v1518 = vld [vmem:[%s12 + $0x18] sm:$0xff]
    %v1519 = vld [vmem:[%s12 + $0x20] sm:$0xff]
    %v1520 = vld [vmem:[%s12 + $0x28] sm:$0xff]
    %v1521 = vld [vmem:[%s12 + $0x30] sm:$0xff]
    %v1522 = vld [vmem:[%s12 + $0x38] sm:$0xff]
    %vm1523 = vcmask 523264
    %v1525 = vsel %vm1523, %v1513, 0
    %v1528 = vsel %vm1523, %v1514, 0
    %1530 = vmatprep.subr.mxu0 0.0
    %1531 = vmatpush1.msra.mxu0 %v1515
    %1532 = vmatprep.subr.mxu0 0.0
    %1533 = vmatpush1.msra.mxu0 %v1516
    %1534 = vmatprep.subr.mxu0 0.0
    %1535 = vmatpush1.msra.mxu0 %v1517
    %1536 = vmatprep.subr.mxu0 0.0
    %1537 = vmatpush1.msra.mxu0 %v1518
    %1538 = vmatprep.subr.mxu0 0.0
    %1539 = vmatpush1.msra.mxu0 %v1519
    %1540 = vmatprep.subr.mxu0 0.0
    %1541 = vmatpush1.msra.mxu0 %v1520
    %1542 = vmatprep.subr.mxu0 0.0
    %1543 = vmatpush1.msra.mxu0 %v1521
    %1544 = vmatprep.subr.mxu0 0.0
    %1545 = vmatpush1.msra.mxu0 %v1522
    %1546 = vmatprep.subr.mxu0 0.0
    %1547 = vmatpush1.msra.mxu0 0.0
    %1548 = vmatprep.subr.mxu0 0.0
    %1549 = vmatpush1.msra.mxu0 0.0
    %1550 = vmatprep.subr.mxu0 0.0
    %1551 = vmatpush1.msra.mxu0 0.0
    %1552 = vmatprep.subr.mxu0 0.0
    %1553 = vmatpush1.msra.mxu0 0.0
    %1554 = vmatprep.subr.mxu0 0.0
    %1555 = vmatpush1.msra.mxu0 0.0
    %1556 = vmatprep.subr.mxu0 0.0
    %1557 = vmatpush1.msra.mxu0 0.0
    %1558 = vmatprep.subr.mxu0 0.0
    %1559 = vmatpush1.msra.mxu0 0.0
    %1560 = vmatprep.subr.mxu0 0.0
    %1561 = vmatpush1.msra.mxu0 0.0
    %1562 = vmatprep.subr.mxu0 0.0
    %1563 = vmatpush1.msra.mxu0 0.0
    %1564 = vmatprep.subr.mxu0 0.0
    %1565 = vmatpush1.msra.mxu0 0.0
    %1566 = vmatprep.subr.mxu0 0.0
    %1567 = vmatpush1.msra.mxu0 0.0
    %1568 = vmatprep.subr.mxu0 0.0
    %1569 = vmatpush1.msra.mxu0 0.0
    %1570 = vmatprep.subr.mxu0 0.0
    %1571 = vmatpush1.msra.mxu0 0.0
    %1572 = vmatprep.subr.mxu0 0.0
    %1573 = vmatpush1.msra.mxu0 0.0
    %1574 = vmatprep.subr.mxu0 0.0
    %1575 = vmatpush1.msra.mxu0 0.0
    %1576 = vmatprep.subr.mxu0 0.0
    %1577 = vmatpush1.msra.mxu0 0.0
    %1578 = vmatprep.subr.mxu0 0.0
    %1579 = vmatpush1.msra.mxu0 0.0
    %1580 = vmatprep.subr.mxu0 0.0
    %1581 = vmatpush1.msra.mxu0 0.0
    %1582 = vmatprep.subr.mxu0 0.0
    %1583 = vmatpush1.msra.mxu0 0.0
    %1584 = vmatprep.subr.mxu0 0.0
    %1585 = vmatpush1.msra.mxu0 0.0
    %1586 = vmatprep.subr.mxu0 0.0
    %1587 = vmatpush1.msra.mxu0 0.0
    %1588 = vmatprep.subr.mxu0 0.0
    %1589 = vmatpush1.msra.mxu0 0.0
    %1590 = vmatprep.subr.mxu0 0.0
    %1591 = vmatpush1.msra.mxu0 0.0
    %1592 = vmatprep.subr.mxu0 0.0
    %1593 = vmatpush1.msra.mxu0 0.0
    %1594 = vmatprep.mubr.f32.mxu0 0.0
    %1595 = vmatmul.mubr.f32.gmra.mrb[0].mxu0 %v1525
    %v1596 = vpop.f32.mrb[0].mxu0
    %v1597 = vadd.f32 0.0, %v1596
    %v1598 = vpop.f32.mrb[0].mxu0
    %1599 = vmatprep.mubr.f32.mxu0 0.0
    %1600 = vmatmul.mubr.f32.gmra.mrb[0].mxu0 %v1528
    %v1601 = vpop.f32.mrb[0].mxu0
    %v1602 = vadd.f32 0.0, %v1601
    %v1603 = vpop.f32.mrb[0].mxu0
    %1604 = vdwg.mxu0
    %v1605 = vadd.f32 %v1361, %v1597
    %v1606 = vadd.f32 %v1362, %v1602
    %v1607 = vld [vmem:[%s13] sm:$0x1]
    %v1609 = vlaneseq
    %v1610 = vshrl.u32 %v1609, 7
    %v1611 = vsub.s32 0, %v1610
    %v1612 = vrot.slane %v1607, %v1611
    %v1614 = vadd.f32 %v1605, %v1612
    %v1615 = vadd.f32 %v1606, %v1612
    %1616 = vst.msk [vmem:[#allocation2] sm:$0xff] %vm52, %v1614
    %1617 = vst.msk [vmem:[#allocation2 + $0x8] sm:$0xff] %vm52, %v1615
    // Predicated region
    $region58: #{encoder_sublayer.1} parent=1 // pred_check
      _
    $region59: #{encoder_sublayer.1} parent=1 // pred_check_branch
      %1619 = sbr.rel (0) target = $region61
    $region60: #{encoder_sublayer.1} parent=1 // pred_region
      %s1621 = ssub.s32 256, 256
      %1622 = vsyncadd [#allocation3], %s1621
      %s1623 = sshll.u32 [#allocation2], 4
      %s1624 = int_to_ptr.vmem [resolvable:$true] %s1623
      %1629 = dma.vmem_to_hbm [thread:$0]  %s1624, 256, %s14, [#allocation3], 128, 128, 8
    $region61: #{encoder_sublayer.1} parent=1 // pred_fallthru
      _
    // Predicated region
    $region62: #{encoder_sublayer.1} parent=1 // pred_check
      _
    $region63: #{encoder_sublayer.1} parent=1 // pred_check_branch
      %1631 = sbr.rel (0) target = $region65
    $region64: #{encoder_sublayer.1} parent=1 // pred_region
      %1632 = dma.done [#allocation3], 256
    $region65: #{encoder_sublayer.1} parent=1 // pred_fallthru
      _
    %1633 = vsyncpa [#allocation3], 1

</llo_original>
